<compile_context>
chip_gen: v7x
topology: tpu7x:2x2x1
jax: 0.10.0
libtpu: 0.0.40
codegen_flags: <defaults>
</compile_context>

<pallas_src>
import functools

import jax
import jax.numpy as jnp
import numpy as np
from jax.experimental import pallas as pl
from jax.experimental.pallas import tpu as pltpu

# ---------------- ETMC "args" (small, consistent with the module) -----------
IMG_CHANNELS = 3
IMG_SIZE = 16
PATCH = 8                        # (IMG_SIZE // PATCH) ** 2 == NUM_IMAGE_EMBEDS
NUM_IMAGE_EMBEDS = 4
IMG_HIDDEN_SZ = 32
HIDDEN = (64,)                   # args.hidden (one hidden layer)
N_CLASSES = 8
DROPOUT = 0.1                    # eval mode -> identity

PATCH_DIM = IMG_CHANNELS * PATCH * PATCH              # 192
FEAT_DIM = IMG_HIDDEN_SZ * NUM_IMAGE_EMBEDS           # 128
ENC_IN = NUM_IMAGE_EMBEDS * PATCH_DIM                 # 768 (block-diag matmul input)
PAD_CLASSES = 128                                     # lane-dense padded class axis


def _vmem_spec():
    return pl.BlockSpec(memory_space=pltpu.MemorySpace.VMEM)


def _softplus(x):
    # numerically stable, matches torch.nn.functional.softplus
    return jnp.maximum(x, 0.0) + jnp.log1p(jnp.exp(-jnp.abs(x)))


# ---------------------------------------------------------------------------
# Fused forward kernel
# ---------------------------------------------------------------------------
def _etmc_fused_kernel(
    # inputs
    rgb_p_ref, depth_p_ref,
    enc_w_ref, enc_b_ref,        # (2,768,128), (2,1,128)   [rgb, depth]
    w1_ref, b1_ref,              # (4,128,64),  (3,1,64)    [d, r, pseudo_rgb, pseudo_depth] / [d, r, pseudo]
    w2_ref, b2_ref,              # (3,64,128),  (3,1,128)   [d, r, pseudo] (class-padded)
    # outputs
    depth_alpha_ref, rgb_alpha_ref, pseudo_alpha_ref, fused_alpha_ref,
    *, n_classes,
):
    f32 = jnp.float32

    # Class mask over the 128-lane padded class axis (only first n_classes real).
    lane = jax.lax.broadcasted_iota(jnp.int32, (1, PAD_CLASSES), 1)
    mask = lane < n_classes

    # ---- patch embeddings (block-diagonal weight == per-patch linear) -------
    rgb_feat = (
        jnp.dot(rgb_p_ref[...], enc_w_ref[0], preferred_element_type=f32)
        + enc_b_ref[0]
    )                                                           # (B, 128)
    depth_feat = (
        jnp.dot(depth_p_ref[...], enc_w_ref[1], preferred_element_type=f32)
        + enc_b_ref[1]
    )                                                           # (B, 128)

    def head_alpha(x, w1, b1, w2, b2):
        h = jnp.maximum(jnp.dot(x, w1, preferred_element_type=f32) + b1, 0.0)
        logits = jnp.dot(h, w2, preferred_element_type=f32) + b2   # (B, 128)
        evidence = jnp.where(mask, _softplus(logits), 0.0)
        return evidence + 1.0                                      # padded cols == 1

    depth_alpha = head_alpha(depth_feat, w1_ref[0], b1_ref[0], w2_ref[0], b2_ref[0])
    rgb_alpha = head_alpha(rgb_feat, w1_ref[1], b1_ref[1], w2_ref[1], b2_ref[1])

    # pseudo head: cat([rgb, depth], -1) @ W1 == rgb @ W1a + depth @ W1b
    h = jnp.maximum(
        jnp.dot(rgb_feat, w1_ref[2], preferred_element_type=f32)
        + jnp.dot(depth_feat, w1_ref[3], preferred_element_type=f32)
        + b1_ref[2],
        0.0,
    )
    logits = jnp.dot(h, w2_ref[2], preferred_element_type=f32) + b2_ref[2]
    pseudo_alpha = jnp.where(mask, _softplus(logits), 0.0) + 1.0

    # ---- Dempster-Shafer combination of two Dirichlet alphas ----------------
    def ds_combin(a1, a2):
        c = jnp.float32(n_classes)
        # masked sums: only the real classes contribute
        S0 = jnp.sum(jnp.where(mask, a1, 0.0), axis=1, keepdims=True)
        S1 = jnp.sum(jnp.where(mask, a2, 0.0), axis=1, keepdims=True)
        b0 = (a1 - 1.0) / S0          # padded cols are exactly 0 (alpha == 1)
        b1 = (a2 - 1.0) / S1
        u0 = c / S0
        u1 = c / S1
        # bmm(b0[:,:,None], b1[:,None,:]) summed over (1,2) minus its diagonal
        bb_sum = jnp.sum(b0, axis=1, keepdims=True) * jnp.sum(
            b1, axis=1, keepdims=True
        )
        bb_diag = jnp.sum(b0 * b1, axis=1, keepdims=True)
        K = bb_sum - bb_diag
        denom = 1.0 - K               # no clamp, matches PyTorch reference
        b_a = (b0 * b1 + b0 * u1 + b1 * u0) / denom
        u_a = (u0 * u1) / denom
        S_a = c / u_a
        return jnp.where(mask, b_a * S_a, 0.0) + 1.0

    depth_rgb = ds_combin(depth_alpha, rgb_alpha)
    fused = ds_combin(depth_rgb, pseudo_alpha)

    # lane-dense (B, 128) stores
    depth_alpha_ref[...] = depth_alpha
    rgb_alpha_ref[...] = rgb_alpha
    pseudo_alpha_ref[...] = pseudo_alpha
    fused_alpha_ref[...] = fused


def _etmc_fused_call(B, inputs):
    out_shape = tuple(
        jax.ShapeDtypeStruct((B, PAD_CLASSES), jnp.float32) for _ in range(4)
    )
    # advisory cost hint for XLA scheduling
    flops = (
        2 * (2 * B * ENC_IN * FEAT_DIM)                # two encoder matmuls
        + 4 * (2 * B * FEAT_DIM * HIDDEN[0])           # 3 heads layer-1 (+ pseudo extra half)
        + 3 * (2 * B * HIDDEN[0] * PAD_CLASSES)        # 3 heads layer-2
    )
    bytes_accessed = sum(int(x.size) * 4 for x in inputs) + 4 * B * PAD_CLASSES * 4
    transcendentals = 3 * B * PAD_CLASSES * 2          # exp + log1p per head

    return pl.pallas_call(
        functools.partial(_etmc_fused_kernel, n_classes=N_CLASSES),
        out_shape=out_shape,
        in_specs=[_vmem_spec()] * len(inputs),
        out_specs=tuple(_vmem_spec() for _ in range(4)),
        cost_estimate=pl.CostEstimate(
            flops=flops,
            transcendentals=transcendentals,
            bytes_accessed=bytes_accessed,
        ),
    )(*inputs)


# ---------------------------------------------------------------------------
# Patchify (plain JAX, trace-time layout plumbing only)
# ---------------------------------------------------------------------------
def _patchify(x_nchw):
    # TODO(synk): the original ImageEncoder (ResNet backbone + adaptive pool)
    # was not provided; a deterministic linear patch-embedding producing
    # (B, num_image_embeds, img_hidden_sz) stands in for it.
    B, C, H, W = x_nchw.shape
    gh, gw = H // PATCH, W // PATCH
    p = x_nchw.reshape(B, C, gh, PATCH, gw, PATCH)
    p = p.transpose(0, 2, 4, 1, 3, 5)                  # (B, gh, gw, C, P, P)
    return p.reshape(B, gh * gw * C * PATCH * PATCH)   # (B, NIE * PATCH_DIM)


# ---------------------------------------------------------------------------
# Parameter init (deterministic, PyTorch nn.Linear-style uniform).  Raw params
# feed the pure-JAX reference; pack_params() builds the kernel-friendly padded
# / split / block-diagonal / stacked slabs once.
# ---------------------------------------------------------------------------
def _init_linear(key, din, dout):
    k1, k2 = jax.random.split(key)
    bound = 1.0 / jnp.sqrt(jnp.float32(din))
    w = jax.random.uniform(k1, (din, dout), jnp.float32, -bound, bound)
    b = jax.random.uniform(k2, (1, dout), jnp.float32, -bound, bound)
    return w, b


def init_params(key):
    hidden = HIDDEN[0]
    keys = jax.random.split(key, 8)
    w_enc_r, b_enc_r = _init_linear(keys[0], PATCH_DIM, IMG_HIDDEN_SZ)
    w_enc_d, b_enc_d = _init_linear(keys[1], PATCH_DIM, IMG_HIDDEN_SZ)
    w1_d, b1_d = _init_linear(keys[2], FEAT_DIM, hidden)
    w2_d, b2_d = _init_linear(keys[3], hidden, N_CLASSES)
    w1_r, b1_r = _init_linear(keys[4], FEAT_DIM, hidden)
    w2_r, b2_r = _init_linear(keys[5], hidden, N_CLASSES)
    w1_c, b1_c = _init_linear(keys[6], 2 * FEAT_DIM, hidden)
    w2_c, b2_c = _init_linear(keys[7], hidden, N_CLASSES)
    return {
        "w_enc_rgb": w_enc_r, "b_enc_rgb": b_enc_r,
        "w_enc_depth": w_enc_d, "b_enc_depth": b_enc_d,
        "w1_d": w1_d, "b1_d": b1_d, "w2_d": w2_d, "b2_d": b2_d,
        "w1_r": w1_r, "b1_r": b1_r, "w2_r": w2_r, "b2_r": b2_r,
        "w1_c": w1_c, "b1_c": b1_c, "w2_c": w2_c, "b2_c": b2_c,
    }


def _pad_classes(x):
    return jnp.pad(x, ((0, 0), (0, PAD_CLASSES - N_CLASSES)))


def pack_params(p):
    """Stack the small per-head params into a few VMEM-friendly slabs."""
    eye = jnp.eye(NUM_IMAGE_EMBEDS, dtype=jnp.float32)
    enc_w = jnp.stack(
        [jnp.kron(eye, p["w_enc_rgb"]), jnp.kron(eye, p["w_enc_depth"])]
    )                                                          # (2, 768, 128)
    enc_b = jnp.stack(
        [jnp.tile(p["b_enc_rgb"], (1, NUM_IMAGE_EMBEDS)),
         jnp.tile(p["b_enc_depth"], (1, NUM_IMAGE_EMBEDS))]
    )                                                          # (2, 1, 128)
    w1 = jnp.stack(
        [p["w1_d"], p["w1_r"], p["w1_c"][:FEAT_DIM], p["w1_c"][FEAT_DIM:]]
    )                                                          # (4, 128, 64)
    b1 = jnp.stack([p["b1_d"], p["b1_r"], p["b1_c"]])          # (3, 1, 64)
    w2 = jnp.stack(
        [_pad_classes(p["w2_d"]), _pad_classes(p["w2_r"]), _pad_classes(p["w2_c"])]
    )                                                          # (3, 64, 128)
    b2 = jnp.stack(
        [_pad_classes(p["b2_d"]), _pad_classes(p["b2_r"]), _pad_classes(p["b2_c"])]
    )                                                          # (3, 1, 128)
    return {"enc_w": enc_w, "enc_b": enc_b, "w1": w1, "b1": b1, "w2": w2, "b2": b2}


# ---------------------------------------------------------------------------
# ETMC forward: patchify -> ONE fused pallas_call -> slice real classes
# ---------------------------------------------------------------------------
@jax.jit
def etmc_forward(packed, rgb, depth):
    B = rgb.shape[0]
    rgb_p = _patchify(rgb)        # (B, 768)
    depth_p = _patchify(depth)    # (B, 768)

    inputs = (
        rgb_p, depth_p,
        packed["enc_w"], packed["enc_b"],
        packed["w1"], packed["b1"],
        packed["w2"], packed["b2"],
    )
    depth_alpha, rgb_alpha, pseudo_alpha, fused_alpha = _etmc_fused_call(B, inputs)

    # drop lane padding
    return (
        depth_alpha[:, :N_CLASSES],
        rgb_alpha[:, :N_CLASSES],
        pseudo_alpha[:, :N_CLASSES],
        fused_alpha[:, :N_CLASSES],
    )


# ---------------------------------------------------------------------------
# Pure-JAX reference (mirrors the PyTorch ETMC forward, eval-mode dropout)
# ---------------------------------------------------------------------------
def etmc_reference(p, rgb, depth):
    prec = jax.lax.Precision.HIGHEST

    def encode(x, w, b):
        B = x.shape[0]
        patches = _patchify(x).reshape(B, NUM_IMAGE_EMBEDS, PATCH_DIM)
        feat = jnp.einsum("bnd,dh->bnh", patches, w, precision=prec) + b
        return feat.reshape(B, FEAT_DIM)

    rgb_feat = encode(rgb, p["w_enc_rgb"], p["b_enc_rgb"])
    depth_feat = encode(depth, p["w_enc_depth"], p["b_enc_depth"])

    def head(x, w1, b1, w2, b2):
        h = jnp.maximum(jnp.dot(x, w1, precision=prec) + b1, 0.0)
        logits = jnp.dot(h, w2, precision=prec) + b2
        return _softplus(logits) + 1.0

    depth_alpha = head(depth_feat, p["w1_d"], p["b1_d"], p["w2_d"], p["b2_d"])
    rgb_alpha = head(rgb_feat, p["w1_r"], p["b1_r"], p["w2_r"], p["b2_r"])
    pseudo_in = jnp.concatenate([rgb_feat, depth_feat], axis=-1)
    pseudo_alpha = head(pseudo_in, p["w1_c"], p["b1_c"], p["w2_c"], p["b2_c"])

    def ds_combin_two(a1, a2):
        c = float(N_CLASSES)
        S0 = a1.sum(1, keepdims=True)
        S1 = a2.sum(1, keepdims=True)
        b0, b1 = (a1 - 1.0) / S0, (a2 - 1.0) / S1
        u0, u1 = c / S0, c / S1
        bb_sum = b0.sum(1, keepdims=True) * b1.sum(1, keepdims=True)
        bb_diag = (b0 * b1).sum(1, keepdims=True)
        K = bb_sum - bb_diag
        b_a = (b0 * b1 + b0 * u1 + b1 * u0) / (1.0 - K)
        u_a = u0 * u1 / (1.0 - K)
        S_a = c / u_a
        return b_a * S_a + 1.0

    fused = ds_combin_two(ds_combin_two(depth_alpha, rgb_alpha), pseudo_alpha)
    return depth_alpha, rgb_alpha, pseudo_alpha, fused


if __name__ == "__main__":
    key = jax.random.PRNGKey(0)
    k_param, k_rgb, k_depth = jax.random.split(key, 3)

    params = init_params(k_param)
    packed = jax.tree_util.tree_map(jax.block_until_ready, pack_params(params))

    B = 2
    rgb = jax.random.normal(k_rgb, (B, IMG_CHANNELS, IMG_SIZE, IMG_SIZE), jnp.float32)
    depth = jax.random.normal(
        k_depth, (B, IMG_CHANNELS, IMG_SIZE, IMG_SIZE), jnp.float32
    )

    outs = etmc_forward(packed, rgb, depth)
    outs = jax.block_until_ready(outs)

    depth_alpha, rgb_alpha, pseudo_alpha, depth_rgb_alpha = outs
    assert depth_alpha.shape == (B, N_CLASSES)
    assert rgb_alpha.shape == (B, N_CLASSES)
    assert pseudo_alpha.shape == (B, N_CLASSES)
    assert depth_rgb_alpha.shape == (B, N_CLASSES)
    # alphas are evidence + 1 >= 1
    assert bool(jnp.all(depth_alpha >= 1.0))
    assert bool(jnp.all(rgb_alpha >= 1.0))
    assert bool(jnp.all(pseudo_alpha >= 1.0))
    assert bool(jnp.all(jnp.isfinite(depth_rgb_alpha)))

    # correctness vs. pure-JAX reference (tolerance covers MXU vs XLA matmul
    # precision differences; any wiring / masking / DS bug would blow past it)
    refs = etmc_reference(params, rgb, depth)
    for got, want in zip(outs, refs):
        np.testing.assert_allclose(np.asarray(got), np.asarray(want),
                                   rtol=2e-2, atol=2e-2)

    print("KERNEL_OK")
</pallas_src>

<mosaic_0001>
module attributes {stable_mosaic.version = 11 : i64} {
  func.func @_etmc_fused_kernel(%arg0: memref<2x768xf32, #tpu.memory_space<vmem>>, %arg1: memref<2x768xf32, #tpu.memory_space<vmem>>, %arg2: memref<2x768x128xf32, #tpu.memory_space<vmem>>, %arg3: memref<2x1x128xf32, #tpu.memory_space<vmem>>, %arg4: memref<4x128x64xf32, #tpu.memory_space<vmem>>, %arg5: memref<3x1x64xf32, #tpu.memory_space<vmem>>, %arg6: memref<3x64x128xf32, #tpu.memory_space<vmem>>, %arg7: memref<3x1x128xf32, #tpu.memory_space<vmem>>, %arg8: memref<2x128xf32, #tpu.memory_space<vmem>>, %arg9: memref<2x128xf32, #tpu.memory_space<vmem>>, %arg10: memref<2x128xf32, #tpu.memory_space<vmem>>, %arg11: memref<2x128xf32, #tpu.memory_space<vmem>>) attributes {dimension_semantics = [], scalar_prefetch = 0 : i64, scratch_operands = 0 : i64, tpu.core_type = #tpu.core_type<tc>} {
    %0 = tpu.iota {dimensions = array<i32: 1>} : vector<1x128xi32>
    %c8_i32 = arith.constant 8 : i32
    %1 = vector.broadcast %c8_i32 : i32 to vector<1x128xi32>
    %2 = arith.cmpi slt, %0, %1 : vector<1x128xi32>
    %c0 = arith.constant 0 : index
    %c0_0 = arith.constant 0 : index
    %3 = vector.load %arg0[%c0, %c0_0] : memref<2x768xf32, #tpu.memory_space<vmem>>, vector<2x768xf32>
    %c0_1 = arith.constant 0 : index
    %c0_2 = arith.constant 0 : index
    %c0_3 = arith.constant 0 : index
    %4 = vector.load %arg2[%c0_1, %c0_2, %c0_3] : memref<2x768x128xf32, #tpu.memory_space<vmem>>, vector<1x768x128xf32>
    %5 = vector.shape_cast %4 : vector<1x768x128xf32> to vector<768x128xf32>
    %cst = arith.constant dense<0.000000e+00> : vector<2x128xf32>
    %6 = tpu.matmul %3, %5, %cst {dimension_numbers = #tpu.dot_dimension_numbers<[1], [0], [0], [1], [0, 0, 1, 1], [], []>} : vector<2x768xf32>, vector<768x128xf32>, vector<2x128xf32> -> vector<2x128xf32>
    %c0_4 = arith.constant 0 : index
    %c0_5 = arith.constant 0 : index
    %c0_6 = arith.constant 0 : index
    %7 = vector.load %arg3[%c0_4, %c0_5, %c0_6] : memref<2x1x128xf32, #tpu.memory_space<vmem>>, vector<1x1x128xf32>
    %8 = vector.shape_cast %7 : vector<1x1x128xf32> to vector<1x128xf32>
    %9 = vector.broadcast %8 : vector<1x128xf32> to vector<2x128xf32>
    %10 = arith.addf %6, %9 : vector<2x128xf32>
    %c0_7 = arith.constant 0 : index
    %c0_8 = arith.constant 0 : index
    %11 = vector.load %arg1[%c0_7, %c0_8] : memref<2x768xf32, #tpu.memory_space<vmem>>, vector<2x768xf32>
    %c1 = arith.constant 1 : index
    %c0_9 = arith.constant 0 : index
    %c0_10 = arith.constant 0 : index
    %12 = vector.load %arg2[%c1, %c0_9, %c0_10] : memref<2x768x128xf32, #tpu.memory_space<vmem>>, vector<1x768x128xf32>
    %13 = vector.shape_cast %12 : vector<1x768x128xf32> to vector<768x128xf32>
    %cst_11 = arith.constant dense<0.000000e+00> : vector<2x128xf32>
    %14 = tpu.matmul %11, %13, %cst_11 {dimension_numbers = #tpu.dot_dimension_numbers<[1], [0], [0], [1], [0, 0, 1, 1], [], []>} : vector<2x768xf32>, vector<768x128xf32>, vector<2x128xf32> -> vector<2x128xf32>
    %c1_12 = arith.constant 1 : index
    %c0_13 = arith.constant 0 : index
    %c0_14 = arith.constant 0 : index
    %15 = vector.load %arg3[%c1_12, %c0_13, %c0_14] : memref<2x1x128xf32, #tpu.memory_space<vmem>>, vector<1x1x128xf32>
    %16 = vector.shape_cast %15 : vector<1x1x128xf32> to vector<1x128xf32>
    %17 = vector.broadcast %16 : vector<1x128xf32> to vector<2x128xf32>
    %18 = arith.addf %14, %17 : vector<2x128xf32>
    %c0_15 = arith.constant 0 : index
    %c0_16 = arith.constant 0 : index
    %c0_17 = arith.constant 0 : index
    %19 = vector.load %arg4[%c0_15, %c0_16, %c0_17] : memref<4x128x64xf32, #tpu.memory_space<vmem>>, vector<1x128x64xf32>
    %20 = vector.shape_cast %19 : vector<1x128x64xf32> to vector<128x64xf32>
    %c0_18 = arith.constant 0 : index
    %c0_19 = arith.constant 0 : index
    %c0_20 = arith.constant 0 : index
    %21 = vector.load %arg5[%c0_18, %c0_19, %c0_20] : memref<3x1x64xf32, #tpu.memory_space<vmem>>, vector<1x1x64xf32>
    %22 = vector.shape_cast %21 : vector<1x1x64xf32> to vector<1x64xf32>
    %c0_21 = arith.constant 0 : index
    %c0_22 = arith.constant 0 : index
    %c0_23 = arith.constant 0 : index
    %23 = vector.load %arg6[%c0_21, %c0_22, %c0_23] : memref<3x64x128xf32, #tpu.memory_space<vmem>>, vector<1x64x128xf32>
    %24 = vector.shape_cast %23 : vector<1x64x128xf32> to vector<64x128xf32>
    %c0_24 = arith.constant 0 : index
    %c0_25 = arith.constant 0 : index
    %c0_26 = arith.constant 0 : index
    %25 = vector.load %arg7[%c0_24, %c0_25, %c0_26] : memref<3x1x128xf32, #tpu.memory_space<vmem>>, vector<1x1x128xf32>
    %26 = vector.shape_cast %25 : vector<1x1x128xf32> to vector<1x128xf32>
    %cst_27 = arith.constant dense<0.000000e+00> : vector<2x64xf32>
    %27 = tpu.matmul %18, %20, %cst_27 {dimension_numbers = #tpu.dot_dimension_numbers<[1], [0], [0], [1], [0, 0, 1, 1], [], []>} : vector<2x128xf32>, vector<128x64xf32>, vector<2x64xf32> -> vector<2x64xf32>
    %28 = vector.broadcast %22 : vector<1x64xf32> to vector<2x64xf32>
    %29 = arith.addf %27, %28 : vector<2x64xf32>
    %cst_28 = arith.constant 0.000000e+00 : f32
    %30 = vector.broadcast %cst_28 : f32 to vector<2x64xf32>
    %31 = arith.maximumf %29, %30 : vector<2x64xf32>
    %cst_29 = arith.constant dense<0.000000e+00> : vector<2x128xf32>
    %32 = tpu.matmul %31, %24, %cst_29 {dimension_numbers = #tpu.dot_dimension_numbers<[1], [0], [0], [1], [0, 0, 1, 1], [], []>} : vector<2x64xf32>, vector<64x128xf32>, vector<2x128xf32> -> vector<2x128xf32>
    %33 = vector.broadcast %26 : vector<1x128xf32> to vector<2x128xf32>
    %34 = arith.addf %32, %33 : vector<2x128xf32>
    %cst_30 = arith.constant 0.000000e+00 : f32
    %35 = vector.broadcast %cst_30 : f32 to vector<2x128xf32>
    %36 = arith.maximumf %34, %35 : vector<2x128xf32>
    %37 = math.absf %34 : vector<2x128xf32>
    %cst_31 = arith.constant 0.000000e+00 : f32
    %38 = vector.broadcast %cst_31 : f32 to vector<2x128xf32>
    %39 = arith.subf %38, %37 : vector<2x128xf32>
    %40 = math.exp %39 : vector<2x128xf32>
    %41 = math.log1p %40 : vector<2x128xf32>
    %42 = arith.addf %36, %41 : vector<2x128xf32>
    %cst_32 = arith.constant 0.000000e+00 : f32
    %43 = vector.shape_cast %2 : vector<1x128xi1> to vector<1x128xi1>
    %44 = vector.broadcast %43 : vector<1x128xi1> to vector<2x128xi1>
    %45 = vector.broadcast %cst_32 : f32 to vector<2x128xf32>
    %46 = arith.select %44, %42, %45 : vector<2x128xi1>, vector<2x128xf32>
    %cst_33 = arith.constant 1.000000e+00 : f32
    %47 = vector.broadcast %cst_33 : f32 to vector<2x128xf32>
    %48 = arith.addf %46, %47 : vector<2x128xf32>
    %c1_34 = arith.constant 1 : index
    %c0_35 = arith.constant 0 : index
    %c0_36 = arith.constant 0 : index
    %49 = vector.load %arg4[%c1_34, %c0_35, %c0_36] : memref<4x128x64xf32, #tpu.memory_space<vmem>>, vector<1x128x64xf32>
    %50 = vector.shape_cast %49 : vector<1x128x64xf32> to vector<128x64xf32>
    %c1_37 = arith.constant 1 : index
    %c0_38 = arith.constant 0 : index
    %c0_39 = arith.constant 0 : index
    %51 = vector.load %arg5[%c1_37, %c0_38, %c0_39] : memref<3x1x64xf32, #tpu.memory_space<vmem>>, vector<1x1x64xf32>
    %52 = vector.shape_cast %51 : vector<1x1x64xf32> to vector<1x64xf32>
    %c1_40 = arith.constant 1 : index
    %c0_41 = arith.constant 0 : index
    %c0_42 = arith.constant 0 : index
    %53 = vector.load %arg6[%c1_40, %c0_41, %c0_42] : memref<3x64x128xf32, #tpu.memory_space<vmem>>, vector<1x64x128xf32>
    %54 = vector.shape_cast %53 : vector<1x64x128xf32> to vector<64x128xf32>
    %c1_43 = arith.constant 1 : index
    %c0_44 = arith.constant 0 : index
    %c0_45 = arith.constant 0 : index
    %55 = vector.load %arg7[%c1_43, %c0_44, %c0_45] : memref<3x1x128xf32, #tpu.memory_space<vmem>>, vector<1x1x128xf32>
    %56 = vector.shape_cast %55 : vector<1x1x128xf32> to vector<1x128xf32>
    %cst_46 = arith.constant dense<0.000000e+00> : vector<2x64xf32>
    %57 = tpu.matmul %10, %50, %cst_46 {dimension_numbers = #tpu.dot_dimension_numbers<[1], [0], [0], [1], [0, 0, 1, 1], [], []>} : vector<2x128xf32>, vector<128x64xf32>, vector<2x64xf32> -> vector<2x64xf32>
    %58 = vector.broadcast %52 : vector<1x64xf32> to vector<2x64xf32>
    %59 = arith.addf %57, %58 : vector<2x64xf32>
    %cst_47 = arith.constant 0.000000e+00 : f32
    %60 = vector.broadcast %cst_47 : f32 to vector<2x64xf32>
    %61 = arith.maximumf %59, %60 : vector<2x64xf32>
    %cst_48 = arith.constant dense<0.000000e+00> : vector<2x128xf32>
    %62 = tpu.matmul %61, %54, %cst_48 {dimension_numbers = #tpu.dot_dimension_numbers<[1], [0], [0], [1], [0, 0, 1, 1], [], []>} : vector<2x64xf32>, vector<64x128xf32>, vector<2x128xf32> -> vector<2x128xf32>
    %63 = vector.broadcast %56 : vector<1x128xf32> to vector<2x128xf32>
    %64 = arith.addf %62, %63 : vector<2x128xf32>
    %cst_49 = arith.constant 0.000000e+00 : f32
    %65 = vector.broadcast %cst_49 : f32 to vector<2x128xf32>
    %66 = arith.maximumf %64, %65 : vector<2x128xf32>
    %67 = math.absf %64 : vector<2x128xf32>
    %cst_50 = arith.constant 0.000000e+00 : f32
    %68 = vector.broadcast %cst_50 : f32 to vector<2x128xf32>
    %69 = arith.subf %68, %67 : vector<2x128xf32>
    %70 = math.exp %69 : vector<2x128xf32>
    %71 = math.log1p %70 : vector<2x128xf32>
    %72 = arith.addf %66, %71 : vector<2x128xf32>
    %cst_51 = arith.constant 0.000000e+00 : f32
    %73 = vector.shape_cast %2 : vector<1x128xi1> to vector<1x128xi1>
    %74 = vector.broadcast %73 : vector<1x128xi1> to vector<2x128xi1>
    %75 = vector.broadcast %cst_51 : f32 to vector<2x128xf32>
    %76 = arith.select %74, %72, %75 : vector<2x128xi1>, vector<2x128xf32>
    %cst_52 = arith.constant 1.000000e+00 : f32
    %77 = vector.broadcast %cst_52 : f32 to vector<2x128xf32>
    %78 = arith.addf %76, %77 : vector<2x128xf32>
    %c2 = arith.constant 2 : index
    %c0_53 = arith.constant 0 : index
    %c0_54 = arith.constant 0 : index
    %79 = vector.load %arg4[%c2, %c0_53, %c0_54] : memref<4x128x64xf32, #tpu.memory_space<vmem>>, vector<1x128x64xf32>
    %80 = vector.shape_cast %79 : vector<1x128x64xf32> to vector<128x64xf32>
    %cst_55 = arith.constant dense<0.000000e+00> : vector<2x64xf32>
    %81 = tpu.matmul %10, %80, %cst_55 {dimension_numbers = #tpu.dot_dimension_numbers<[1], [0], [0], [1], [0, 0, 1, 1], [], []>} : vector<2x128xf32>, vector<128x64xf32>, vector<2x64xf32> -> vector<2x64xf32>
    %c3 = arith.constant 3 : index
    %c0_56 = arith.constant 0 : index
    %c0_57 = arith.constant 0 : index
    %82 = vector.load %arg4[%c3, %c0_56, %c0_57] : memref<4x128x64xf32, #tpu.memory_space<vmem>>, vector<1x128x64xf32>
    %83 = vector.shape_cast %82 : vector<1x128x64xf32> to vector<128x64xf32>
    %cst_58 = arith.constant dense<0.000000e+00> : vector<2x64xf32>
    %84 = tpu.matmul %18, %83, %cst_58 {dimension_numbers = #tpu.dot_dimension_numbers<[1], [0], [0], [1], [0, 0, 1, 1], [], []>} : vector<2x128xf32>, vector<128x64xf32>, vector<2x64xf32> -> vector<2x64xf32>
    %85 = arith.addf %81, %84 : vector<2x64xf32>
    %c2_59 = arith.constant 2 : index
    %c0_60 = arith.constant 0 : index
    %c0_61 = arith.constant 0 : index
    %86 = vector.load %arg5[%c2_59, %c0_60, %c0_61] : memref<3x1x64xf32, #tpu.memory_space<vmem>>, vector<1x1x64xf32>
    %87 = vector.shape_cast %86 : vector<1x1x64xf32> to vector<1x64xf32>
    %88 = vector.broadcast %87 : vector<1x64xf32> to vector<2x64xf32>
    %89 = arith.addf %85, %88 : vector<2x64xf32>
    %cst_62 = arith.constant 0.000000e+00 : f32
    %90 = vector.broadcast %cst_62 : f32 to vector<2x64xf32>
    %91 = arith.maximumf %89, %90 : vector<2x64xf32>
    %c2_63 = arith.constant 2 : index
    %c0_64 = arith.constant 0 : index
    %c0_65 = arith.constant 0 : index
    %92 = vector.load %arg6[%c2_63, %c0_64, %c0_65] : memref<3x64x128xf32, #tpu.memory_space<vmem>>, vector<1x64x128xf32>
    %93 = vector.shape_cast %92 : vector<1x64x128xf32> to vector<64x128xf32>
    %cst_66 = arith.constant dense<0.000000e+00> : vector<2x128xf32>
    %94 = tpu.matmul %91, %93, %cst_66 {dimension_numbers = #tpu.dot_dimension_numbers<[1], [0], [0], [1], [0, 0, 1, 1], [], []>} : vector<2x64xf32>, vector<64x128xf32>, vector<2x128xf32> -> vector<2x128xf32>
    %c2_67 = arith.constant 2 : index
    %c0_68 = arith.constant 0 : index
    %c0_69 = arith.constant 0 : index
    %95 = vector.load %arg7[%c2_67, %c0_68, %c0_69] : memref<3x1x128xf32, #tpu.memory_space<vmem>>, vector<1x1x128xf32>
    %96 = vector.shape_cast %95 : vector<1x1x128xf32> to vector<1x128xf32>
    %97 = vector.broadcast %96 : vector<1x128xf32> to vector<2x128xf32>
    %98 = arith.addf %94, %97 : vector<2x128xf32>
    %cst_70 = arith.constant 0.000000e+00 : f32
    %99 = vector.broadcast %cst_70 : f32 to vector<2x128xf32>
    %100 = arith.maximumf %98, %99 : vector<2x128xf32>
    %101 = math.absf %98 : vector<2x128xf32>
    %cst_71 = arith.constant 0.000000e+00 : f32
    %102 = vector.broadcast %cst_71 : f32 to vector<2x128xf32>
    %103 = arith.subf %102, %101 : vector<2x128xf32>
    %104 = math.exp %103 : vector<2x128xf32>
    %105 = math.log1p %104 : vector<2x128xf32>
    %106 = arith.addf %100, %105 : vector<2x128xf32>
    %cst_72 = arith.constant 0.000000e+00 : f32
    %107 = vector.shape_cast %2 : vector<1x128xi1> to vector<1x128xi1>
    %108 = vector.broadcast %107 : vector<1x128xi1> to vector<2x128xi1>
    %109 = vector.broadcast %cst_72 : f32 to vector<2x128xf32>
    %110 = arith.select %108, %106, %109 : vector<2x128xi1>, vector<2x128xf32>
    %cst_73 = arith.constant 1.000000e+00 : f32
    %111 = vector.broadcast %cst_73 : f32 to vector<2x128xf32>
    %112 = arith.addf %110, %111 : vector<2x128xf32>
    %cst_74 = arith.constant 0.000000e+00 : f32
    %113 = vector.shape_cast %2 : vector<1x128xi1> to vector<1x128xi1>
    %114 = vector.broadcast %113 : vector<1x128xi1> to vector<2x128xi1>
    %115 = vector.broadcast %cst_74 : f32 to vector<2x128xf32>
    %116 = arith.select %114, %48, %115 : vector<2x128xi1>, vector<2x128xf32>
    %cst_75 = arith.constant dense<0.000000e+00> : vector<2xf32>
    %117 = vector.multi_reduction <add>, %116, %cst_75 [1] : vector<2x128xf32> to vector<2xf32>
    %118 = vector.shape_cast %117 : vector<2xf32> to vector<2x1xf32>
    %cst_76 = arith.constant 0.000000e+00 : f32
    %119 = vector.shape_cast %2 : vector<1x128xi1> to vector<1x128xi1>
    %120 = vector.broadcast %119 : vector<1x128xi1> to vector<2x128xi1>
    %121 = vector.broadcast %cst_76 : f32 to vector<2x128xf32>
    %122 = arith.select %120, %78, %121 : vector<2x128xi1>, vector<2x128xf32>
    %cst_77 = arith.constant dense<0.000000e+00> : vector<2xf32>
    %123 = vector.multi_reduction <add>, %122, %cst_77 [1] : vector<2x128xf32> to vector<2xf32>
    %124 = vector.shape_cast %123 : vector<2xf32> to vector<2x1xf32>
    %cst_78 = arith.constant 1.000000e+00 : f32
    %125 = vector.broadcast %cst_78 : f32 to vector<2x128xf32>
    %126 = arith.subf %48, %125 : vector<2x128xf32>
    %127 = vector.broadcast %118 : vector<2x1xf32> to vector<2x128xf32>
    %128 = arith.divf %126, %127 : vector<2x128xf32>
    %cst_79 = arith.constant 1.000000e+00 : f32
    %129 = vector.broadcast %cst_79 : f32 to vector<2x128xf32>
    %130 = arith.subf %78, %129 : vector<2x128xf32>
    %131 = vector.broadcast %124 : vector<2x1xf32> to vector<2x128xf32>
    %132 = arith.divf %130, %131 : vector<2x128xf32>
    %cst_80 = arith.constant 8.000000e+00 : f32
    %133 = vector.broadcast %cst_80 : f32 to vector<2x1xf32>
    %134 = arith.divf %133, %118 : vector<2x1xf32>
    %cst_81 = arith.constant 8.000000e+00 : f32
    %135 = vector.broadcast %cst_81 : f32 to vector<2x1xf32>
    %136 = arith.divf %135, %124 : vector<2x1xf32>
    %cst_82 = arith.constant dense<0.000000e+00> : vector<2xf32>
    %137 = vector.multi_reduction <add>, %128, %cst_82 [1] : vector<2x128xf32> to vector<2xf32>
    %138 = vector.shape_cast %137 : vector<2xf32> to vector<2x1xf32>
    %cst_83 = arith.constant dense<0.000000e+00> : vector<2xf32>
    %139 = vector.multi_reduction <add>, %132, %cst_83 [1] : vector<2x128xf32> to vector<2xf32>
    %140 = vector.shape_cast %139 : vector<2xf32> to vector<2x1xf32>
    %141 = arith.mulf %138, %140 : vector<2x1xf32>
    %142 = arith.mulf %128, %132 : vector<2x128xf32>
    %cst_84 = arith.constant dense<0.000000e+00> : vector<2xf32>
    %143 = vector.multi_reduction <add>, %142, %cst_84 [1] : vector<2x128xf32> to vector<2xf32>
    %144 = vector.shape_cast %143 : vector<2xf32> to vector<2x1xf32>
    %145 = arith.subf %141, %144 : vector<2x1xf32>
    %cst_85 = arith.constant 1.000000e+00 : f32
    %146 = vector.broadcast %cst_85 : f32 to vector<2x1xf32>
    %147 = arith.subf %146, %145 : vector<2x1xf32>
    %148 = arith.mulf %128, %132 : vector<2x128xf32>
    %149 = vector.broadcast %136 : vector<2x1xf32> to vector<2x128xf32>
    %150 = arith.mulf %128, %149 : vector<2x128xf32>
    %151 = arith.addf %148, %150 : vector<2x128xf32>
    %152 = vector.broadcast %134 : vector<2x1xf32> to vector<2x128xf32>
    %153 = arith.mulf %132, %152 : vector<2x128xf32>
    %154 = arith.addf %151, %153 : vector<2x128xf32>
    %155 = vector.broadcast %147 : vector<2x1xf32> to vector<2x128xf32>
    %156 = arith.divf %154, %155 : vector<2x128xf32>
    %157 = arith.mulf %134, %136 : vector<2x1xf32>
    %158 = arith.divf %157, %147 : vector<2x1xf32>
    %cst_86 = arith.constant 8.000000e+00 : f32
    %159 = vector.broadcast %cst_86 : f32 to vector<2x1xf32>
    %160 = arith.divf %159, %158 : vector<2x1xf32>
    %161 = vector.broadcast %160 : vector<2x1xf32> to vector<2x128xf32>
    %162 = arith.mulf %156, %161 : vector<2x128xf32>
    %cst_87 = arith.constant 0.000000e+00 : f32
    %163 = vector.shape_cast %2 : vector<1x128xi1> to vector<1x128xi1>
    %164 = vector.broadcast %163 : vector<1x128xi1> to vector<2x128xi1>
    %165 = vector.broadcast %cst_87 : f32 to vector<2x128xf32>
    %166 = arith.select %164, %162, %165 : vector<2x128xi1>, vector<2x128xf32>
    %cst_88 = arith.constant 1.000000e+00 : f32
    %167 = vector.broadcast %cst_88 : f32 to vector<2x128xf32>
    %168 = arith.addf %166, %167 : vector<2x128xf32>
    %cst_89 = arith.constant 0.000000e+00 : f32
    %169 = vector.shape_cast %2 : vector<1x128xi1> to vector<1x128xi1>
    %170 = vector.broadcast %169 : vector<1x128xi1> to vector<2x128xi1>
    %171 = vector.broadcast %cst_89 : f32 to vector<2x128xf32>
    %172 = arith.select %170, %168, %171 : vector<2x128xi1>, vector<2x128xf32>
    %cst_90 = arith.constant dense<0.000000e+00> : vector<2xf32>
    %173 = vector.multi_reduction <add>, %172, %cst_90 [1] : vector<2x128xf32> to vector<2xf32>
    %174 = vector.shape_cast %173 : vector<2xf32> to vector<2x1xf32>
    %cst_91 = arith.constant 0.000000e+00 : f32
    %175 = vector.shape_cast %2 : vector<1x128xi1> to vector<1x128xi1>
    %176 = vector.broadcast %175 : vector<1x128xi1> to vector<2x128xi1>
    %177 = vector.broadcast %cst_91 : f32 to vector<2x128xf32>
    %178 = arith.select %176, %112, %177 : vector<2x128xi1>, vector<2x128xf32>
    %cst_92 = arith.constant dense<0.000000e+00> : vector<2xf32>
    %179 = vector.multi_reduction <add>, %178, %cst_92 [1] : vector<2x128xf32> to vector<2xf32>
    %180 = vector.shape_cast %179 : vector<2xf32> to vector<2x1xf32>
    %cst_93 = arith.constant 1.000000e+00 : f32
    %181 = vector.broadcast %cst_93 : f32 to vector<2x128xf32>
    %182 = arith.subf %168, %181 : vector<2x128xf32>
    %183 = vector.broadcast %174 : vector<2x1xf32> to vector<2x128xf32>
    %184 = arith.divf %182, %183 : vector<2x128xf32>
    %cst_94 = arith.constant 1.000000e+00 : f32
    %185 = vector.broadcast %cst_94 : f32 to vector<2x128xf32>
    %186 = arith.subf %112, %185 : vector<2x128xf32>
    %187 = vector.broadcast %180 : vector<2x1xf32> to vector<2x128xf32>
    %188 = arith.divf %186, %187 : vector<2x128xf32>
    %cst_95 = arith.constant 8.000000e+00 : f32
    %189 = vector.broadcast %cst_95 : f32 to vector<2x1xf32>
    %190 = arith.divf %189, %174 : vector<2x1xf32>
    %cst_96 = arith.constant 8.000000e+00 : f32
    %191 = vector.broadcast %cst_96 : f32 to vector<2x1xf32>
    %192 = arith.divf %191, %180 : vector<2x1xf32>
    %cst_97 = arith.constant dense<0.000000e+00> : vector<2xf32>
    %193 = vector.multi_reduction <add>, %184, %cst_97 [1] : vector<2x128xf32> to vector<2xf32>
    %194 = vector.shape_cast %193 : vector<2xf32> to vector<2x1xf32>
    %cst_98 = arith.constant dense<0.000000e+00> : vector<2xf32>
    %195 = vector.multi_reduction <add>, %188, %cst_98 [1] : vector<2x128xf32> to vector<2xf32>
    %196 = vector.shape_cast %195 : vector<2xf32> to vector<2x1xf32>
    %197 = arith.mulf %194, %196 : vector<2x1xf32>
    %198 = arith.mulf %184, %188 : vector<2x128xf32>
    %cst_99 = arith.constant dense<0.000000e+00> : vector<2xf32>
    %199 = vector.multi_reduction <add>, %198, %cst_99 [1] : vector<2x128xf32> to vector<2xf32>
    %200 = vector.shape_cast %199 : vector<2xf32> to vector<2x1xf32>
    %201 = arith.subf %197, %200 : vector<2x1xf32>
    %cst_100 = arith.constant 1.000000e+00 : f32
    %202 = vector.broadcast %cst_100 : f32 to vector<2x1xf32>
    %203 = arith.subf %202, %201 : vector<2x1xf32>
    %204 = arith.mulf %184, %188 : vector<2x128xf32>
    %205 = vector.broadcast %192 : vector<2x1xf32> to vector<2x128xf32>
    %206 = arith.mulf %184, %205 : vector<2x128xf32>
    %207 = arith.addf %204, %206 : vector<2x128xf32>
    %208 = vector.broadcast %190 : vector<2x1xf32> to vector<2x128xf32>
    %209 = arith.mulf %188, %208 : vector<2x128xf32>
    %210 = arith.addf %207, %209 : vector<2x128xf32>
    %211 = vector.broadcast %203 : vector<2x1xf32> to vector<2x128xf32>
    %212 = arith.divf %210, %211 : vector<2x128xf32>
    %213 = arith.mulf %190, %192 : vector<2x1xf32>
    %214 = arith.divf %213, %203 : vector<2x1xf32>
    %cst_101 = arith.constant 8.000000e+00 : f32
    %215 = vector.broadcast %cst_101 : f32 to vector<2x1xf32>
    %216 = arith.divf %215, %214 : vector<2x1xf32>
    %217 = vector.broadcast %216 : vector<2x1xf32> to vector<2x128xf32>
    %218 = arith.mulf %212, %217 : vector<2x128xf32>
    %cst_102 = arith.constant 0.000000e+00 : f32
    %219 = vector.shape_cast %2 : vector<1x128xi1> to vector<1x128xi1>
    %220 = vector.broadcast %219 : vector<1x128xi1> to vector<2x128xi1>
    %221 = vector.broadcast %cst_102 : f32 to vector<2x128xf32>
    %222 = arith.select %220, %218, %221 : vector<2x128xi1>, vector<2x128xf32>
    %cst_103 = arith.constant 1.000000e+00 : f32
    %223 = vector.broadcast %cst_103 : f32 to vector<2x128xf32>
    %224 = arith.addf %222, %223 : vector<2x128xf32>
    %c0_104 = arith.constant 0 : index
    %c0_105 = arith.constant 0 : index
    %225 = vector.load %arg8[%c0_104, %c0_105] : memref<2x128xf32, #tpu.memory_space<vmem>>, vector<2x128xf32>
    tpu.vector_store %arg8[%c0_104, %c0_105], %48 {strides = array<i32>} : memref<2x128xf32, #tpu.memory_space<vmem>>, vector<2x128xf32>,
    %c0_106 = arith.constant 0 : index
    %c0_107 = arith.constant 0 : index
    %226 = vector.load %arg9[%c0_106, %c0_107] : memref<2x128xf32, #tpu.memory_space<vmem>>, vector<2x128xf32>
    tpu.vector_store %arg9[%c0_106, %c0_107], %78 {strides = array<i32>} : memref<2x128xf32, #tpu.memory_space<vmem>>, vector<2x128xf32>,
    %c0_108 = arith.constant 0 : index
    %c0_109 = arith.constant 0 : index
    %227 = vector.load %arg10[%c0_108, %c0_109] : memref<2x128xf32, #tpu.memory_space<vmem>>, vector<2x128xf32>
    tpu.vector_store %arg10[%c0_108, %c0_109], %112 {strides = array<i32>} : memref<2x128xf32, #tpu.memory_space<vmem>>, vector<2x128xf32>,
    %c0_110 = arith.constant 0 : index
    %c0_111 = arith.constant 0 : index
    %228 = vector.load %arg11[%c0_110, %c0_111] : memref<2x128xf32, #tpu.memory_space<vmem>>, vector<2x128xf32>
    tpu.vector_store %arg11[%c0_110, %c0_111], %224 {strides = array<i32>} : memref<2x128xf32, #tpu.memory_space<vmem>>, vector<2x128xf32>,
    return
  }
}

</mosaic_0001>

<llo_original>
// kernel: etmc_forward.1
$region0: #{etmc_forward.1}
  #allocation0 [shape = 'u32[]', space=smem, size = 0x4, offset = 0x4, fixed_abs, tag = 'smem constant byte address 0x4 - core index']
  #allocation1 [shape = 'u32[144,128]{1,0:T(1,128)}', space=vmem, size = 0x12000, scoped, tag = 'internal scratch']
  %s0 = inlined_call_operand.vmem [shape: f32[2,768], index: 0, kind: input, shape index: {}]
  %s1 = inlined_call_operand.vmem [shape: f32[2,768], index: 1, kind: input, shape index: {}]
  %s2 = inlined_call_operand.vmem [shape: f32[2,768,128], index: 2, kind: input, shape index: {}]
  %s3 = inlined_call_operand.vmem [shape: f32[2,1,128], index: 3, kind: input, shape index: {}]
  %s4 = inlined_call_operand.vmem [shape: f32[4,128,64], index: 4, kind: input, shape index: {}]
  %s5 = inlined_call_operand.vmem [shape: f32[3,1,64], index: 5, kind: input, shape index: {}]
  %s6 = inlined_call_operand.vmem [shape: f32[3,64,128], index: 6, kind: input, shape index: {}]
  %s7 = inlined_call_operand.vmem [shape: f32[3,1,128], index: 7, kind: input, shape index: {}]
  %s8 = inlined_call_operand.hbm [shape: f32[2,128], index: 8, kind: output, shape index: {0}]
  %s9 = inlined_call_operand.hbm [shape: f32[2,128], index: 9, kind: output, shape index: {1}]
  %s10 = inlined_call_operand.hbm [shape: f32[2,128], index: 10, kind: output, shape index: {2}]
  %s11 = inlined_call_operand.hbm [shape: f32[2,128], index: 11, kind: output, shape index: {3}]
  %12 = xla_tuple %s8, %s9, %s10, %s11
  %s13 = sld [smem:[#allocation0]]
  $region66: #{etmc_forward.1} parent=0
    _
  %s15 = ssub.s32 1, %s13
  %s16 = scalar_select 0, %s15, %s13
  $region1: #{etmc_forward.1} parent=0
    #allocation2 [shape = 'u8[1024]{0}', space=vmem, size = 0x400, scoped, tag = 'output window, operand 0, single buffered']
    #allocation3 [shape = 's32[1]{0}', space=sflag, size = 0x4, scoped, tag = 'scoped memory for etmc_forward.1']
    #allocation4 [shape = 'u8[1024]{0}', space=vmem, size = 0x400, scoped, tag = 'output window, operand 1, single buffered']
    #allocation5 [shape = 's32[1]{0}', space=sflag, size = 0x4, scoped, tag = 'scoped memory for etmc_forward.1']
    #allocation6 [shape = 'u8[1024]{0}', space=vmem, size = 0x400, scoped, tag = 'output window, operand 2, single buffered']
    #allocation7 [shape = 'u8[1024]{0}', space=vmem, size = 0x400, scoped, tag = 'output window, operand 3, single buffered']
    #allocation8 [shape = 's32[1]{0}', space=sflag, size = 0x4, scoped, tag = 'scoped memory for etmc_forward.1']
    %17 = vsyncpa [#allocation3], 0
    %18 = vsyncpa [#allocation5], 0
    %19 = vsyncpa [#allocation8], 0
    // Predicated region
    $region2: #{etmc_forward.1} parent=1 // pred_check
      _
    $region3: #{etmc_forward.1} parent=1 // pred_check_branch
      %21 = sbr.rel (0) target = $region5
    $region4: #{etmc_forward.1} parent=1 // pred_region
      _
    $region5: #{etmc_forward.1} parent=1 // pred_fallthru
      _
    // Predicated region
    $region6: #{etmc_forward.1} parent=1 // pred_check
      _
    $region7: #{etmc_forward.1} parent=1 // pred_check_branch
      %23 = sbr.rel (0) target = $region9
    $region8: #{etmc_forward.1} parent=1 // pred_region
      _
    $region9: #{etmc_forward.1} parent=1 // pred_fallthru
      _
    // Predicated region
    $region10: #{etmc_forward.1} parent=1 // pred_check
      _
    $region11: #{etmc_forward.1} parent=1 // pred_check_branch
      %25 = sbr.rel (0) target = $region13
    $region12: #{etmc_forward.1} parent=1 // pred_region
      _
    $region13: #{etmc_forward.1} parent=1 // pred_fallthru
      _
    // Predicated region
    $region14: #{etmc_forward.1} parent=1 // pred_check
      _
    $region15: #{etmc_forward.1} parent=1 // pred_check_branch
      %27 = sbr.rel (0) target = $region17
    $region16: #{etmc_forward.1} parent=1 // pred_region
      _
    $region17: #{etmc_forward.1} parent=1 // pred_fallthru
      _
    // Predicated region
    $region18: #{etmc_forward.1} parent=1 // pred_check
      _
    $region19: #{etmc_forward.1} parent=1 // pred_check_branch
      %29 = sbr.rel (0) target = $region21
    $region20: #{etmc_forward.1} parent=1 // pred_region
      _
    $region21: #{etmc_forward.1} parent=1 // pred_fallthru
      _
    // Predicated region
    $region22: #{etmc_forward.1} parent=1 // pred_check
      _
    $region23: #{etmc_forward.1} parent=1 // pred_check_branch
      %31 = sbr.rel (0) target = $region25
    $region24: #{etmc_forward.1} parent=1 // pred_region
      _
    $region25: #{etmc_forward.1} parent=1 // pred_fallthru
      _
    // Predicated region
    $region26: #{etmc_forward.1} parent=1 // pred_check
      _
    $region27: #{etmc_forward.1} parent=1 // pred_check_branch
      %33 = sbr.rel (0) target = $region29
    $region28: #{etmc_forward.1} parent=1 // pred_region
      _
    $region29: #{etmc_forward.1} parent=1 // pred_fallthru
      _
    // Predicated region
    $region30: #{etmc_forward.1} parent=1 // pred_check
      _
    $region31: #{etmc_forward.1} parent=1 // pred_check_branch
      %35 = sbr.rel (0) target = $region33
    $region32: #{etmc_forward.1} parent=1 // pred_region
      _
    $region33: #{etmc_forward.1} parent=1 // pred_fallthru
      _
    %v36 = vlaneseq
    %v37 = vand.u32 %v36, 127
    %vm38 = vcmp.lt.s32.totalorder %v37, 8
    %v39 = vld [vmem:[%s0] sm:$0xff]
    %v40 = vld [vmem:[%s0 + $0x8] sm:$0xf]
    %v41 = vld [vmem:[%s2] sm:$0xff]
    %v42 = vld [vmem:[%s2 + $0x8] sm:$0xff]
    %v43 = vld [vmem:[%s2 + $0x10] sm:$0xff]
    %v44 = vld [vmem:[%s2 + $0x18] sm:$0xff]
    %v45 = vld [vmem:[%s2 + $0x20] sm:$0xff]
    %v46 = vld [vmem:[%s2 + $0x28] sm:$0xff]
    %v47 = vld [vmem:[%s2 + $0x30] sm:$0xff]
    %v48 = vld [vmem:[%s2 + $0x38] sm:$0xff]
    %v49 = vld [vmem:[%s2 + $0x40] sm:$0xff]
    %v50 = vld [vmem:[%s2 + $0x48] sm:$0xff]
    %v51 = vld [vmem:[%s2 + $0x50] sm:$0xff]
    %v52 = vld [vmem:[%s2 + $0x58] sm:$0xff]
    %v53 = vld [vmem:[%s2 + $0x60] sm:$0xff]
    %v54 = vld [vmem:[%s2 + $0x68] sm:$0xff]
    %v55 = vld [vmem:[%s2 + $0x70] sm:$0xff]
    %v56 = vld [vmem:[%s2 + $0x78] sm:$0xff]
    %v57 = vld [vmem:[%s2 + $0x80] sm:$0xff]
    %v58 = vld [vmem:[%s2 + $0x88] sm:$0xff]
    %v59 = vld [vmem:[%s2 + $0x90] sm:$0xff]
    %v60 = vld [vmem:[%s2 + $0x98] sm:$0xff]
    %v61 = vld [vmem:[%s2 + $0xa0] sm:$0xff]
    %v62 = vld [vmem:[%s2 + $0xa8] sm:$0xff]
    %v63 = vld [vmem:[%s2 + $0xb0] sm:$0xff]
    %v64 = vld [vmem:[%s2 + $0xb8] sm:$0xff]
    %v65 = vld [vmem:[%s2 + $0xc0] sm:$0xff]
    %v66 = vld [vmem:[%s2 + $0xc8] sm:$0xff]
    %v67 = vld [vmem:[%s2 + $0xd0] sm:$0xff]
    %v68 = vld [vmem:[%s2 + $0xd8] sm:$0xff]
    %v69 = vld [vmem:[%s2 + $0xe0] sm:$0xff]
    %v70 = vld [vmem:[%s2 + $0xe8] sm:$0xff]
    %v71 = vld [vmem:[%s2 + $0xf0] sm:$0xff]
    %v72 = vld [vmem:[%s2 + $0xf8] sm:$0xff]
    %v73 = vld [vmem:[%s2 + $0x100] sm:$0xff]
    %v74 = vld [vmem:[%s2 + $0x108] sm:$0xff]
    %v75 = vld [vmem:[%s2 + $0x110] sm:$0xff]
    %v76 = vld [vmem:[%s2 + $0x118] sm:$0xff]
    %v77 = vld [vmem:[%s2 + $0x120] sm:$0xff]
    %v78 = vld [vmem:[%s2 + $0x128] sm:$0xff]
    %v79 = vld [vmem:[%s2 + $0x130] sm:$0xff]
    %v80 = vld [vmem:[%s2 + $0x138] sm:$0xff]
    %v81 = vld [vmem:[%s2 + $0x140] sm:$0xff]
    %v82 = vld [vmem:[%s2 + $0x148] sm:$0xff]
    %v83 = vld [vmem:[%s2 + $0x150] sm:$0xff]
    %v84 = vld [vmem:[%s2 + $0x158] sm:$0xff]
    %v85 = vld [vmem:[%s2 + $0x160] sm:$0xff]
    %v86 = vld [vmem:[%s2 + $0x168] sm:$0xff]
    %v87 = vld [vmem:[%s2 + $0x170] sm:$0xff]
    %v88 = vld [vmem:[%s2 + $0x178] sm:$0xff]
    %v89 = vld [vmem:[%s2 + $0x180] sm:$0xff]
    %v90 = vld [vmem:[%s2 + $0x188] sm:$0xff]
    %v91 = vld [vmem:[%s2 + $0x190] sm:$0xff]
    %v92 = vld [vmem:[%s2 + $0x198] sm:$0xff]
    %v93 = vld [vmem:[%s2 + $0x1a0] sm:$0xff]
    %v94 = vld [vmem:[%s2 + $0x1a8] sm:$0xff]
    %v95 = vld [vmem:[%s2 + $0x1b0] sm:$0xff]
    %v96 = vld [vmem:[%s2 + $0x1b8] sm:$0xff]
    %v97 = vld [vmem:[%s2 + $0x1c0] sm:$0xff]
    %v98 = vld [vmem:[%s2 + $0x1c8] sm:$0xff]
    %v99 = vld [vmem:[%s2 + $0x1d0] sm:$0xff]
    %v100 = vld [vmem:[%s2 + $0x1d8] sm:$0xff]
    %v101 = vld [vmem:[%s2 + $0x1e0] sm:$0xff]
    %v102 = vld [vmem:[%s2 + $0x1e8] sm:$0xff]
    %v103 = vld [vmem:[%s2 + $0x1f0] sm:$0xff]
    %v104 = vld [vmem:[%s2 + $0x1f8] sm:$0xff]
    %v105 = vld [vmem:[%s2 + $0x200] sm:$0xff]
    %v106 = vld [vmem:[%s2 + $0x208] sm:$0xff]
    %v107 = vld [vmem:[%s2 + $0x210] sm:$0xff]
    %v108 = vld [vmem:[%s2 + $0x218] sm:$0xff]
    %v109 = vld [vmem:[%s2 + $0x220] sm:$0xff]
    %v110 = vld [vmem:[%s2 + $0x228] sm:$0xff]
    %v111 = vld [vmem:[%s2 + $0x230] sm:$0xff]
    %v112 = vld [vmem:[%s2 + $0x238] sm:$0xff]
    %v113 = vld [vmem:[%s2 + $0x240] sm:$0xff]
    %v114 = vld [vmem:[%s2 + $0x248] sm:$0xff]
    %v115 = vld [vmem:[%s2 + $0x250] sm:$0xff]
    %v116 = vld [vmem:[%s2 + $0x258] sm:$0xff]
    %v117 = vld [vmem:[%s2 + $0x260] sm:$0xff]
    %v118 = vld [vmem:[%s2 + $0x268] sm:$0xff]
    %v119 = vld [vmem:[%s2 + $0x270] sm:$0xff]
    %v120 = vld [vmem:[%s2 + $0x278] sm:$0xff]
    %v121 = vld [vmem:[%s2 + $0x280] sm:$0xff]
    %v122 = vld [vmem:[%s2 + $0x288] sm:$0xff]
    %v123 = vld [vmem:[%s2 + $0x290] sm:$0xff]
    %v124 = vld [vmem:[%s2 + $0x298] sm:$0xff]
    %v125 = vld [vmem:[%s2 + $0x2a0] sm:$0xff]
    %v126 = vld [vmem:[%s2 + $0x2a8] sm:$0xff]
    %v127 = vld [vmem:[%s2 + $0x2b0] sm:$0xff]
    %v128 = vld [vmem:[%s2 + $0x2b8] sm:$0xff]
    %v129 = vld [vmem:[%s2 + $0x2c0] sm:$0xff]
    %v130 = vld [vmem:[%s2 + $0x2c8] sm:$0xff]
    %v131 = vld [vmem:[%s2 + $0x2d0] sm:$0xff]
    %v132 = vld [vmem:[%s2 + $0x2d8] sm:$0xff]
    %v133 = vld [vmem:[%s2 + $0x2e0] sm:$0xff]
    %v134 = vld [vmem:[%s2 + $0x2e8] sm:$0xff]
    %v135 = vld [vmem:[%s2 + $0x2f0] sm:$0xff]
    %v136 = vld [vmem:[%s2 + $0x2f8] sm:$0xff]
    %v137 = vld [vmem:[%s3] sm:$0x1]
    %v139 = vlaneseq
    %v140 = vshrl.u32 %v139, 7
    %v141 = vsub.s32 0, %v140
    %v142 = vrot.slane %v137, %v141
    %v146 = vcombine.high %v39, %v39
    %v148 = vunpack.c.l.s4 1983009808
    %v149 = vunpack.c.0.s8 %v148
    %v150 = vlaneseq
    %v151 = vshrl.u32 %v150, 7
    %v152 = vsub.s32 %v149, %v151
    %v153 = vrot.slane %v39, %v152
    %v155 = vunpack.c.l.s4 1983009808
    %v156 = vunpack.c.0.s8 %v155
    %v157 = vlaneseq
    %v158 = vshrl.u32 %v157, 7
    %v159 = vsub.s32 %v156, %v158
    %v160 = vrot.slane %v146, %v159
    %v161 = vcombine.high %v153, %v153
    %v162 = vcombine.high %v160, %v160
    %v164 = vunpack.c.l.s4 1983009808
    %v165 = vunpack.c.0.s8 %v164
    %v166 = vlaneseq
    %v167 = vshrl.u32 %v166, 7
    %v168 = vsub.s32 %v165, %v167
    %v169 = vrot.slane %v40, %v168
    %v170 = vcombine.high %v169, %v169
    %177 = vmatprep.subr.mxu0 0.0
    %178 = vmatpush1.msra.mxu0 %v41
    %179 = vmatprep.subr.mxu0 0.0
    %180 = vmatpush1.msra.mxu0 %v42
    %181 = vmatprep.subr.mxu0 0.0
    %182 = vmatpush1.msra.mxu0 %v43
    %183 = vmatprep.subr.mxu0 0.0
    %184 = vmatpush1.msra.mxu0 %v44
    %185 = vmatprep.subr.mxu0 0.0
    %186 = vmatpush1.msra.mxu0 %v45
    %187 = vmatprep.subr.mxu0 0.0
    %188 = vmatpush1.msra.mxu0 %v46
    %189 = vmatprep.subr.mxu0 0.0
    %190 = vmatpush1.msra.mxu0 %v47
    %191 = vmatprep.subr.mxu0 0.0
    %192 = vmatpush1.msra.mxu0 %v48
    %193 = vmatprep.subr.mxu0 0.0
    %194 = vmatpush1.msra.mxu0 %v49
    %195 = vmatprep.subr.mxu0 0.0
    %196 = vmatpush1.msra.mxu0 %v50
    %197 = vmatprep.subr.mxu0 0.0
    %198 = vmatpush1.msra.mxu0 %v51
    %199 = vmatprep.subr.mxu0 0.0
    %200 = vmatpush1.msra.mxu0 %v52
    %201 = vmatprep.subr.mxu0 0.0
    %202 = vmatpush1.msra.mxu0 %v53
    %203 = vmatprep.subr.mxu0 0.0
    %204 = vmatpush1.msra.mxu0 %v54
    %205 = vmatprep.subr.mxu0 0.0
    %206 = vmatpush1.msra.mxu0 %v55
    %207 = vmatprep.subr.mxu0 0.0
    %208 = vmatpush1.msra.mxu0 %v56
    %209 = vmatprep.subr.mxu0 0.0
    %210 = vmatpush1.msra.mxu0 %v57
    %211 = vmatprep.subr.mxu0 0.0
    %212 = vmatpush1.msra.mxu0 %v58
    %213 = vmatprep.subr.mxu0 0.0
    %214 = vmatpush1.msra.mxu0 %v59
    %215 = vmatprep.subr.mxu0 0.0
    %216 = vmatpush1.msra.mxu0 %v60
    %217 = vmatprep.subr.mxu0 0.0
    %218 = vmatpush1.msra.mxu0 %v61
    %219 = vmatprep.subr.mxu0 0.0
    %220 = vmatpush1.msra.mxu0 %v62
    %221 = vmatprep.subr.mxu0 0.0
    %222 = vmatpush1.msra.mxu0 %v63
    %223 = vmatprep.subr.mxu0 0.0
    %224 = vmatpush1.msra.mxu0 %v64
    %225 = vmatprep.subr.mxu0 0.0
    %226 = vmatpush1.msra.mxu0 %v65
    %227 = vmatprep.subr.mxu0 0.0
    %228 = vmatpush1.msra.mxu0 %v66
    %229 = vmatprep.subr.mxu0 0.0
    %230 = vmatpush1.msra.mxu0 %v67
    %231 = vmatprep.subr.mxu0 0.0
    %232 = vmatpush1.msra.mxu0 %v68
    %233 = vmatprep.subr.mxu0 0.0
    %234 = vmatpush1.msra.mxu0 %v69
    %235 = vmatprep.subr.mxu0 0.0
    %236 = vmatpush1.msra.mxu0 %v70
    %237 = vmatprep.subr.mxu0 0.0
    %238 = vmatpush1.msra.mxu0 %v71
    %239 = vmatprep.subr.mxu0 0.0
    %240 = vmatpush1.msra.mxu0 %v72
    %241 = vmatprep.mubr.f32.mxu0 %v161
    %242 = vmatmul.mubr.f32.gmra.mrb[0].mxu0 %v153
    %v243 = vpop.f32.mrb[0].mxu0
    %v244 = vadd.f32 %v142, %v243
    %v245 = vpop.f32.mrb[0].mxu0
    %246 = vdwg.mxu0
    %247 = vmatprep.subr.mxu0 0.0
    %248 = vmatpush1.msra.mxu0 %v73
    %249 = vmatprep.subr.mxu0 0.0
    %250 = vmatpush1.msra.mxu0 %v74
    %251 = vmatprep.subr.mxu0 0.0
    %252 = vmatpush1.msra.mxu0 %v75
    %253 = vmatprep.subr.mxu0 0.0
    %254 = vmatpush1.msra.mxu0 %v76
    %255 = vmatprep.subr.mxu0 0.0
    %256 = vmatpush1.msra.mxu0 %v77
    %257 = vmatprep.subr.mxu0 0.0
    %258 = vmatpush1.msra.mxu0 %v78
    %259 = vmatprep.subr.mxu0 0.0
    %260 = vmatpush1.msra.mxu0 %v79
    %261 = vmatprep.subr.mxu0 0.0
    %262 = vmatpush1.msra.mxu0 %v80
    %263 = vmatprep.subr.mxu0 0.0
    %264 = vmatpush1.msra.mxu0 %v81
    %265 = vmatprep.subr.mxu0 0.0
    %266 = vmatpush1.msra.mxu0 %v82
    %267 = vmatprep.subr.mxu0 0.0
    %268 = vmatpush1.msra.mxu0 %v83
    %269 = vmatprep.subr.mxu0 0.0
    %270 = vmatpush1.msra.mxu0 %v84
    %271 = vmatprep.subr.mxu0 0.0
    %272 = vmatpush1.msra.mxu0 %v85
    %273 = vmatprep.subr.mxu0 0.0
    %274 = vmatpush1.msra.mxu0 %v86
    %275 = vmatprep.subr.mxu0 0.0
    %276 = vmatpush1.msra.mxu0 %v87
    %277 = vmatprep.subr.mxu0 0.0
    %278 = vmatpush1.msra.mxu0 %v88
    %279 = vmatprep.subr.mxu0 0.0
    %280 = vmatpush1.msra.mxu0 %v89
    %281 = vmatprep.subr.mxu0 0.0
    %282 = vmatpush1.msra.mxu0 %v90
    %283 = vmatprep.subr.mxu0 0.0
    %284 = vmatpush1.msra.mxu0 %v91
    %285 = vmatprep.subr.mxu0 0.0
    %286 = vmatpush1.msra.mxu0 %v92
    %287 = vmatprep.subr.mxu0 0.0
    %288 = vmatpush1.msra.mxu0 %v93
    %289 = vmatprep.subr.mxu0 0.0
    %290 = vmatpush1.msra.mxu0 %v94
    %291 = vmatprep.subr.mxu0 0.0
    %292 = vmatpush1.msra.mxu0 %v95
    %293 = vmatprep.subr.mxu0 0.0
    %294 = vmatpush1.msra.mxu0 %v96
    %295 = vmatprep.subr.mxu0 0.0
    %296 = vmatpush1.msra.mxu0 %v97
    %297 = vmatprep.subr.mxu0 0.0
    %298 = vmatpush1.msra.mxu0 %v98
    %299 = vmatprep.subr.mxu0 0.0
    %300 = vmatpush1.msra.mxu0 %v99
    %301 = vmatprep.subr.mxu0 0.0
    %302 = vmatpush1.msra.mxu0 %v100
    %303 = vmatprep.subr.mxu0 0.0
    %304 = vmatpush1.msra.mxu0 %v101
    %305 = vmatprep.subr.mxu0 0.0
    %306 = vmatpush1.msra.mxu0 %v102
    %307 = vmatprep.subr.mxu0 0.0
    %308 = vmatpush1.msra.mxu0 %v103
    %309 = vmatprep.subr.mxu0 0.0
    %310 = vmatpush1.msra.mxu0 %v104
    %311 = vmatprep.mubr.f32.mxu0 %v162
    %312 = vmatmul.mubr.f32.gmra.mrb[0].mxu0 %v160
    %v313 = vpop.f32.mrb[0].mxu0
    %v314 = vadd.f32 %v244, %v313
    %v315 = vpop.f32.mrb[0].mxu0
    %316 = vdwg.mxu0
    %317 = vmatprep.subr.mxu0 0.0
    %318 = vmatpush1.msra.mxu0 %v105
    %319 = vmatprep.subr.mxu0 0.0
    %320 = vmatpush1.msra.mxu0 %v106
    %321 = vmatprep.subr.mxu0 0.0
    %322 = vmatpush1.msra.mxu0 %v107
    %323 = vmatprep.subr.mxu0 0.0
    %324 = vmatpush1.msra.mxu0 %v108
    %325 = vmatprep.subr.mxu0 0.0
    %326 = vmatpush1.msra.mxu0 %v109
    %327 = vmatprep.subr.mxu0 0.0
    %328 = vmatpush1.msra.mxu0 %v110
    %329 = vmatprep.subr.mxu0 0.0
    %330 = vmatpush1.msra.mxu0 %v111
    %331 = vmatprep.subr.mxu0 0.0
    %332 = vmatpush1.msra.mxu0 %v112
    %333 = vmatprep.subr.mxu0 0.0
    %334 = vmatpush1.msra.mxu0 %v113
    %335 = vmatprep.subr.mxu0 0.0
    %336 = vmatpush1.msra.mxu0 %v114
    %337 = vmatprep.subr.mxu0 0.0
    %338 = vmatpush1.msra.mxu0 %v115
    %339 = vmatprep.subr.mxu0 0.0
    %340 = vmatpush1.msra.mxu0 %v116
    %341 = vmatprep.subr.mxu0 0.0
    %342 = vmatpush1.msra.mxu0 %v117
    %343 = vmatprep.subr.mxu0 0.0
    %344 = vmatpush1.msra.mxu0 %v118
    %345 = vmatprep.subr.mxu0 0.0
    %346 = vmatpush1.msra.mxu0 %v119
    %347 = vmatprep.subr.mxu0 0.0
    %348 = vmatpush1.msra.mxu0 %v120
    %349 = vmatprep.subr.mxu0 0.0
    %350 = vmatpush1.msra.mxu0 %v121
    %351 = vmatprep.subr.mxu0 0.0
    %352 = vmatpush1.msra.mxu0 %v122
    %353 = vmatprep.subr.mxu0 0.0
    %354 = vmatpush1.msra.mxu0 %v123
    %355 = vmatprep.subr.mxu0 0.0
    %356 = vmatpush1.msra.mxu0 %v124
    %357 = vmatprep.subr.mxu0 0.0
    %358 = vmatpush1.msra.mxu0 %v125
    %359 = vmatprep.subr.mxu0 0.0
    %360 = vmatpush1.msra.mxu0 %v126
    %361 = vmatprep.subr.mxu0 0.0
    %362 = vmatpush1.msra.mxu0 %v127
    %363 = vmatprep.subr.mxu0 0.0
    %364 = vmatpush1.msra.mxu0 %v128
    %365 = vmatprep.subr.mxu0 0.0
    %366 = vmatpush1.msra.mxu0 %v129
    %367 = vmatprep.subr.mxu0 0.0
    %368 = vmatpush1.msra.mxu0 %v130
    %369 = vmatprep.subr.mxu0 0.0
    %370 = vmatpush1.msra.mxu0 %v131
    %371 = vmatprep.subr.mxu0 0.0
    %372 = vmatpush1.msra.mxu0 %v132
    %373 = vmatprep.subr.mxu0 0.0
    %374 = vmatpush1.msra.mxu0 %v133
    %375 = vmatprep.subr.mxu0 0.0
    %376 = vmatpush1.msra.mxu0 %v134
    %377 = vmatprep.subr.mxu0 0.0
    %378 = vmatpush1.msra.mxu0 %v135
    %379 = vmatprep.subr.mxu0 0.0
    %380 = vmatpush1.msra.mxu0 %v136
    %381 = vmatprep.mubr.f32.mxu0 %v170
    %382 = vmatmul.mubr.f32.gmra.mrb[0].mxu0 %v169
    %v383 = vpop.f32.mrb[0].mxu0
    %v384 = vadd.f32 %v314, %v383
    %v385 = vpop.f32.mrb[0].mxu0
    %386 = vdwg.mxu0
    %v387 = vld [vmem:[%s1] sm:$0xff]
    %v388 = vld [vmem:[%s1 + $0x8] sm:$0xf]
    %s389 = scalar_lea.vmem %s2, 768
    %v390 = vld [vmem:[%s389] sm:$0xff]
    %v391 = vld [vmem:[%s389 + $0x8] sm:$0xff]
    %v392 = vld [vmem:[%s389 + $0x10] sm:$0xff]
    %v393 = vld [vmem:[%s389 + $0x18] sm:$0xff]
    %v394 = vld [vmem:[%s389 + $0x20] sm:$0xff]
    %v395 = vld [vmem:[%s389 + $0x28] sm:$0xff]
    %v396 = vld [vmem:[%s389 + $0x30] sm:$0xff]
    %v397 = vld [vmem:[%s389 + $0x38] sm:$0xff]
    %v398 = vld [vmem:[%s389 + $0x40] sm:$0xff]
    %v399 = vld [vmem:[%s389 + $0x48] sm:$0xff]
    %v400 = vld [vmem:[%s389 + $0x50] sm:$0xff]
    %v401 = vld [vmem:[%s389 + $0x58] sm:$0xff]
    %v402 = vld [vmem:[%s389 + $0x60] sm:$0xff]
    %v403 = vld [vmem:[%s389 + $0x68] sm:$0xff]
    %v404 = vld [vmem:[%s389 + $0x70] sm:$0xff]
    %v405 = vld [vmem:[%s389 + $0x78] sm:$0xff]
    %v406 = vld [vmem:[%s389 + $0x80] sm:$0xff]
    %v407 = vld [vmem:[%s389 + $0x88] sm:$0xff]
    %v408 = vld [vmem:[%s389 + $0x90] sm:$0xff]
    %v409 = vld [vmem:[%s389 + $0x98] sm:$0xff]
    %v410 = vld [vmem:[%s389 + $0xa0] sm:$0xff]
    %v411 = vld [vmem:[%s389 + $0xa8] sm:$0xff]
    %v412 = vld [vmem:[%s389 + $0xb0] sm:$0xff]
    %v413 = vld [vmem:[%s389 + $0xb8] sm:$0xff]
    %v414 = vld [vmem:[%s389 + $0xc0] sm:$0xff]
    %v415 = vld [vmem:[%s389 + $0xc8] sm:$0xff]
    %v416 = vld [vmem:[%s389 + $0xd0] sm:$0xff]
    %v417 = vld [vmem:[%s389 + $0xd8] sm:$0xff]
    %v418 = vld [vmem:[%s389 + $0xe0] sm:$0xff]
    %v419 = vld [vmem:[%s389 + $0xe8] sm:$0xff]
    %v420 = vld [vmem:[%s389 + $0xf0] sm:$0xff]
    %v421 = vld [vmem:[%s389 + $0xf8] sm:$0xff]
    %v422 = vld [vmem:[%s389 + $0x100] sm:$0xff]
    %v423 = vld [vmem:[%s389 + $0x108] sm:$0xff]
    %v424 = vld [vmem:[%s389 + $0x110] sm:$0xff]
    %v425 = vld [vmem:[%s389 + $0x118] sm:$0xff]
    %v426 = vld [vmem:[%s389 + $0x120] sm:$0xff]
    %v427 = vld [vmem:[%s389 + $0x128] sm:$0xff]
    %v428 = vld [vmem:[%s389 + $0x130] sm:$0xff]
    %v429 = vld [vmem:[%s389 + $0x138] sm:$0xff]
    %v430 = vld [vmem:[%s389 + $0x140] sm:$0xff]
    %v431 = vld [vmem:[%s389 + $0x148] sm:$0xff]
    %v432 = vld [vmem:[%s389 + $0x150] sm:$0xff]
    %v433 = vld [vmem:[%s389 + $0x158] sm:$0xff]
    %v434 = vld [vmem:[%s389 + $0x160] sm:$0xff]
    %v435 = vld [vmem:[%s389 + $0x168] sm:$0xff]
    %v436 = vld [vmem:[%s389 + $0x170] sm:$0xff]
    %v437 = vld [vmem:[%s389 + $0x178] sm:$0xff]
    %v438 = vld [vmem:[%s389 + $0x180] sm:$0xff]
    %v439 = vld [vmem:[%s389 + $0x188] sm:$0xff]
    %v440 = vld [vmem:[%s389 + $0x190] sm:$0xff]
    %v441 = vld [vmem:[%s389 + $0x198] sm:$0xff]
    %v442 = vld [vmem:[%s389 + $0x1a0] sm:$0xff]
    %v443 = vld [vmem:[%s389 + $0x1a8] sm:$0xff]
    %v444 = vld [vmem:[%s389 + $0x1b0] sm:$0xff]
    %v445 = vld [vmem:[%s389 + $0x1b8] sm:$0xff]
    %v446 = vld [vmem:[%s389 + $0x1c0] sm:$0xff]
    %v447 = vld [vmem:[%s389 + $0x1c8] sm:$0xff]
    %v448 = vld [vmem:[%s389 + $0x1d0] sm:$0xff]
    %v449 = vld [vmem:[%s389 + $0x1d8] sm:$0xff]
    %v450 = vld [vmem:[%s389 + $0x1e0] sm:$0xff]
    %v451 = vld [vmem:[%s389 + $0x1e8] sm:$0xff]
    %v452 = vld [vmem:[%s389 + $0x1f0] sm:$0xff]
    %v453 = vld [vmem:[%s389 + $0x1f8] sm:$0xff]
    %v454 = vld [vmem:[%s389 + $0x200] sm:$0xff]
    %v455 = vld [vmem:[%s389 + $0x208] sm:$0xff]
    %v456 = vld [vmem:[%s389 + $0x210] sm:$0xff]
    %v457 = vld [vmem:[%s389 + $0x218] sm:$0xff]
    %v458 = vld [vmem:[%s389 + $0x220] sm:$0xff]
    %v459 = vld [vmem:[%s389 + $0x228] sm:$0xff]
    %v460 = vld [vmem:[%s389 + $0x230] sm:$0xff]
    %v461 = vld [vmem:[%s389 + $0x238] sm:$0xff]
    %v462 = vld [vmem:[%s389 + $0x240] sm:$0xff]
    %v463 = vld [vmem:[%s389 + $0x248] sm:$0xff]
    %v464 = vld [vmem:[%s389 + $0x250] sm:$0xff]
    %v465 = vld [vmem:[%s389 + $0x258] sm:$0xff]
    %v466 = vld [vmem:[%s389 + $0x260] sm:$0xff]
    %v467 = vld [vmem:[%s389 + $0x268] sm:$0xff]
    %v468 = vld [vmem:[%s389 + $0x270] sm:$0xff]
    %v469 = vld [vmem:[%s389 + $0x278] sm:$0xff]
    %v470 = vld [vmem:[%s389 + $0x280] sm:$0xff]
    %v471 = vld [vmem:[%s389 + $0x288] sm:$0xff]
    %v472 = vld [vmem:[%s389 + $0x290] sm:$0xff]
    %v473 = vld [vmem:[%s389 + $0x298] sm:$0xff]
    %v474 = vld [vmem:[%s389 + $0x2a0] sm:$0xff]
    %v475 = vld [vmem:[%s389 + $0x2a8] sm:$0xff]
    %v476 = vld [vmem:[%s389 + $0x2b0] sm:$0xff]
    %v477 = vld [vmem:[%s389 + $0x2b8] sm:$0xff]
    %v478 = vld [vmem:[%s389 + $0x2c0] sm:$0xff]
    %v479 = vld [vmem:[%s389 + $0x2c8] sm:$0xff]
    %v480 = vld [vmem:[%s389 + $0x2d0] sm:$0xff]
    %v481 = vld [vmem:[%s389 + $0x2d8] sm:$0xff]
    %v482 = vld [vmem:[%s389 + $0x2e0] sm:$0xff]
    %v483 = vld [vmem:[%s389 + $0x2e8] sm:$0xff]
    %v484 = vld [vmem:[%s389 + $0x2f0] sm:$0xff]
    %v485 = vld [vmem:[%s389 + $0x2f8] sm:$0xff]
    %s486 = scalar_lea.vmem %s3, 1
    %v487 = vld [vmem:[%s486] sm:$0x1]
    %v489 = vlaneseq
    %v490 = vshrl.u32 %v489, 7
    %v491 = vsub.s32 0, %v490
    %v492 = vrot.slane %v487, %v491
    %v496 = vcombine.high %v387, %v387
    %v498 = vunpack.c.l.s4 1983009808
    %v499 = vunpack.c.0.s8 %v498
    %v500 = vlaneseq
    %v501 = vshrl.u32 %v500, 7
    %v502 = vsub.s32 %v499, %v501
    %v503 = vrot.slane %v387, %v502
    %v505 = vunpack.c.l.s4 1983009808
    %v506 = vunpack.c.0.s8 %v505
    %v507 = vlaneseq
    %v508 = vshrl.u32 %v507, 7
    %v509 = vsub.s32 %v506, %v508
    %v510 = vrot.slane %v496, %v509
    %v511 = vcombine.high %v503, %v503
    %v512 = vcombine.high %v510, %v510
    %v514 = vunpack.c.l.s4 1983009808
    %v515 = vunpack.c.0.s8 %v514
    %v516 = vlaneseq
    %v517 = vshrl.u32 %v516, 7
    %v518 = vsub.s32 %v515, %v517
    %v519 = vrot.slane %v388, %v518
    %v520 = vcombine.high %v519, %v519
    %527 = vmatprep.subr.mxu0 0.0
    %528 = vmatpush1.msra.mxu0 %v390
    %529 = vmatprep.subr.mxu0 0.0
    %530 = vmatpush1.msra.mxu0 %v391
    %531 = vmatprep.subr.mxu0 0.0
    %532 = vmatpush1.msra.mxu0 %v392
    %533 = vmatprep.subr.mxu0 0.0
    %534 = vmatpush1.msra.mxu0 %v393
    %535 = vmatprep.subr.mxu0 0.0
    %536 = vmatpush1.msra.mxu0 %v394
    %537 = vmatprep.subr.mxu0 0.0
    %538 = vmatpush1.msra.mxu0 %v395
    %539 = vmatprep.subr.mxu0 0.0
    %540 = vmatpush1.msra.mxu0 %v396
    %541 = vmatprep.subr.mxu0 0.0
    %542 = vmatpush1.msra.mxu0 %v397
    %543 = vmatprep.subr.mxu0 0.0
    %544 = vmatpush1.msra.mxu0 %v398
    %545 = vmatprep.subr.mxu0 0.0
    %546 = vmatpush1.msra.mxu0 %v399
    %547 = vmatprep.subr.mxu0 0.0
    %548 = vmatpush1.msra.mxu0 %v400
    %549 = vmatprep.subr.mxu0 0.0
    %550 = vmatpush1.msra.mxu0 %v401
    %551 = vmatprep.subr.mxu0 0.0
    %552 = vmatpush1.msra.mxu0 %v402
    %553 = vmatprep.subr.mxu0 0.0
    %554 = vmatpush1.msra.mxu0 %v403
    %555 = vmatprep.subr.mxu0 0.0
    %556 = vmatpush1.msra.mxu0 %v404
    %557 = vmatprep.subr.mxu0 0.0
    %558 = vmatpush1.msra.mxu0 %v405
    %559 = vmatprep.subr.mxu0 0.0
    %560 = vmatpush1.msra.mxu0 %v406
    %561 = vmatprep.subr.mxu0 0.0
    %562 = vmatpush1.msra.mxu0 %v407
    %563 = vmatprep.subr.mxu0 0.0
    %564 = vmatpush1.msra.mxu0 %v408
    %565 = vmatprep.subr.mxu0 0.0
    %566 = vmatpush1.msra.mxu0 %v409
    %567 = vmatprep.subr.mxu0 0.0
    %568 = vmatpush1.msra.mxu0 %v410
    %569 = vmatprep.subr.mxu0 0.0
    %570 = vmatpush1.msra.mxu0 %v411
    %571 = vmatprep.subr.mxu0 0.0
    %572 = vmatpush1.msra.mxu0 %v412
    %573 = vmatprep.subr.mxu0 0.0
    %574 = vmatpush1.msra.mxu0 %v413
    %575 = vmatprep.subr.mxu0 0.0
    %576 = vmatpush1.msra.mxu0 %v414
    %577 = vmatprep.subr.mxu0 0.0
    %578 = vmatpush1.msra.mxu0 %v415
    %579 = vmatprep.subr.mxu0 0.0
    %580 = vmatpush1.msra.mxu0 %v416
    %581 = vmatprep.subr.mxu0 0.0
    %582 = vmatpush1.msra.mxu0 %v417
    %583 = vmatprep.subr.mxu0 0.0
    %584 = vmatpush1.msra.mxu0 %v418
    %585 = vmatprep.subr.mxu0 0.0
    %586 = vmatpush1.msra.mxu0 %v419
    %587 = vmatprep.subr.mxu0 0.0
    %588 = vmatpush1.msra.mxu0 %v420
    %589 = vmatprep.subr.mxu0 0.0
    %590 = vmatpush1.msra.mxu0 %v421
    %591 = vmatprep.mubr.f32.mxu0 %v511
    %592 = vmatmul.mubr.f32.gmra.mrb[0].mxu0 %v503
    %v593 = vpop.f32.mrb[0].mxu0
    %v594 = vadd.f32 %v492, %v593
    %v595 = vpop.f32.mrb[0].mxu0
    %596 = vdwg.mxu0
    %597 = vmatprep.subr.mxu0 0.0
    %598 = vmatpush1.msra.mxu0 %v422
    %599 = vmatprep.subr.mxu0 0.0
    %600 = vmatpush1.msra.mxu0 %v423
    %601 = vmatprep.subr.mxu0 0.0
    %602 = vmatpush1.msra.mxu0 %v424
    %603 = vmatprep.subr.mxu0 0.0
    %604 = vmatpush1.msra.mxu0 %v425
    %605 = vmatprep.subr.mxu0 0.0
    %606 = vmatpush1.msra.mxu0 %v426
    %607 = vmatprep.subr.mxu0 0.0
    %608 = vmatpush1.msra.mxu0 %v427
    %609 = vmatprep.subr.mxu0 0.0
    %610 = vmatpush1.msra.mxu0 %v428
    %611 = vmatprep.subr.mxu0 0.0
    %612 = vmatpush1.msra.mxu0 %v429
    %613 = vmatprep.subr.mxu0 0.0
    %614 = vmatpush1.msra.mxu0 %v430
    %615 = vmatprep.subr.mxu0 0.0
    %616 = vmatpush1.msra.mxu0 %v431
    %617 = vmatprep.subr.mxu0 0.0
    %618 = vmatpush1.msra.mxu0 %v432
    %619 = vmatprep.subr.mxu0 0.0
    %620 = vmatpush1.msra.mxu0 %v433
    %621 = vmatprep.subr.mxu0 0.0
    %622 = vmatpush1.msra.mxu0 %v434
    %623 = vmatprep.subr.mxu0 0.0
    %624 = vmatpush1.msra.mxu0 %v435
    %625 = vmatprep.subr.mxu0 0.0
    %626 = vmatpush1.msra.mxu0 %v436
    %627 = vmatprep.subr.mxu0 0.0
    %628 = vmatpush1.msra.mxu0 %v437
    %629 = vmatprep.subr.mxu0 0.0
    %630 = vmatpush1.msra.mxu0 %v438
    %631 = vmatprep.subr.mxu0 0.0
    %632 = vmatpush1.msra.mxu0 %v439
    %633 = vmatprep.subr.mxu0 0.0
    %634 = vmatpush1.msra.mxu0 %v440
    %635 = vmatprep.subr.mxu0 0.0
    %636 = vmatpush1.msra.mxu0 %v441
    %637 = vmatprep.subr.mxu0 0.0
    %638 = vmatpush1.msra.mxu0 %v442
    %639 = vmatprep.subr.mxu0 0.0
    %640 = vmatpush1.msra.mxu0 %v443
    %641 = vmatprep.subr.mxu0 0.0
    %642 = vmatpush1.msra.mxu0 %v444
    %643 = vmatprep.subr.mxu0 0.0
    %644 = vmatpush1.msra.mxu0 %v445
    %645 = vmatprep.subr.mxu0 0.0
    %646 = vmatpush1.msra.mxu0 %v446
    %647 = vmatprep.subr.mxu0 0.0
    %648 = vmatpush1.msra.mxu0 %v447
    %649 = vmatprep.subr.mxu0 0.0
    %650 = vmatpush1.msra.mxu0 %v448
    %651 = vmatprep.subr.mxu0 0.0
    %652 = vmatpush1.msra.mxu0 %v449
    %653 = vmatprep.subr.mxu0 0.0
    %654 = vmatpush1.msra.mxu0 %v450
    %655 = vmatprep.subr.mxu0 0.0
    %656 = vmatpush1.msra.mxu0 %v451
    %657 = vmatprep.subr.mxu0 0.0
    %658 = vmatpush1.msra.mxu0 %v452
    %659 = vmatprep.subr.mxu0 0.0
    %660 = vmatpush1.msra.mxu0 %v453
    %661 = vmatprep.mubr.f32.mxu0 %v512
    %662 = vmatmul.mubr.f32.gmra.mrb[0].mxu0 %v510
    %v663 = vpop.f32.mrb[0].mxu0
    %v664 = vadd.f32 %v594, %v663
    %v665 = vpop.f32.mrb[0].mxu0
    %666 = vdwg.mxu0
    %667 = vmatprep.subr.mxu0 0.0
    %668 = vmatpush1.msra.mxu0 %v454
    %669 = vmatprep.subr.mxu0 0.0
    %670 = vmatpush1.msra.mxu0 %v455
    %671 = vmatprep.subr.mxu0 0.0
    %672 = vmatpush1.msra.mxu0 %v456
    %673 = vmatprep.subr.mxu0 0.0
    %674 = vmatpush1.msra.mxu0 %v457
    %675 = vmatprep.subr.mxu0 0.0
    %676 = vmatpush1.msra.mxu0 %v458
    %677 = vmatprep.subr.mxu0 0.0
    %678 = vmatpush1.msra.mxu0 %v459
    %679 = vmatprep.subr.mxu0 0.0
    %680 = vmatpush1.msra.mxu0 %v460
    %681 = vmatprep.subr.mxu0 0.0
    %682 = vmatpush1.msra.mxu0 %v461
    %683 = vmatprep.subr.mxu0 0.0
    %684 = vmatpush1.msra.mxu0 %v462
    %685 = vmatprep.subr.mxu0 0.0
    %686 = vmatpush1.msra.mxu0 %v463
    %687 = vmatprep.subr.mxu0 0.0
    %688 = vmatpush1.msra.mxu0 %v464
    %689 = vmatprep.subr.mxu0 0.0
    %690 = vmatpush1.msra.mxu0 %v465
    %691 = vmatprep.subr.mxu0 0.0
    %692 = vmatpush1.msra.mxu0 %v466
    %693 = vmatprep.subr.mxu0 0.0
    %694 = vmatpush1.msra.mxu0 %v467
    %695 = vmatprep.subr.mxu0 0.0
    %696 = vmatpush1.msra.mxu0 %v468
    %697 = vmatprep.subr.mxu0 0.0
    %698 = vmatpush1.msra.mxu0 %v469
    %699 = vmatprep.subr.mxu0 0.0
    %700 = vmatpush1.msra.mxu0 %v470
    %701 = vmatprep.subr.mxu0 0.0
    %702 = vmatpush1.msra.mxu0 %v471
    %703 = vmatprep.subr.mxu0 0.0
    %704 = vmatpush1.msra.mxu0 %v472
    %705 = vmatprep.subr.mxu0 0.0
    %706 = vmatpush1.msra.mxu0 %v473
    %707 = vmatprep.subr.mxu0 0.0
    %708 = vmatpush1.msra.mxu0 %v474
    %709 = vmatprep.subr.mxu0 0.0
    %710 = vmatpush1.msra.mxu0 %v475
    %711 = vmatprep.subr.mxu0 0.0
    %712 = vmatpush1.msra.mxu0 %v476
    %713 = vmatprep.subr.mxu0 0.0
    %714 = vmatpush1.msra.mxu0 %v477
    %715 = vmatprep.subr.mxu0 0.0
    %716 = vmatpush1.msra.mxu0 %v478
    %717 = vmatprep.subr.mxu0 0.0
    %718 = vmatpush1.msra.mxu0 %v479
    %719 = vmatprep.subr.mxu0 0.0
    %720 = vmatpush1.msra.mxu0 %v480
    %721 = vmatprep.subr.mxu0 0.0
    %722 = vmatpush1.msra.mxu0 %v481
    %723 = vmatprep.subr.mxu0 0.0
    %724 = vmatpush1.msra.mxu0 %v482
    %725 = vmatprep.subr.mxu0 0.0
    %726 = vmatpush1.msra.mxu0 %v483
    %727 = vmatprep.subr.mxu0 0.0
    %728 = vmatpush1.msra.mxu0 %v484
    %729 = vmatprep.subr.mxu0 0.0
    %730 = vmatpush1.msra.mxu0 %v485
    %731 = vmatprep.mubr.f32.mxu0 %v520
    %732 = vmatmul.mubr.f32.gmra.mrb[0].mxu0 %v519
    %v733 = vpop.f32.mrb[0].mxu0
    %v734 = vadd.f32 %v664, %v733
    %v735 = vpop.f32.mrb[0].mxu0
    %736 = vdwg.mxu0
    %v737 = vld [vmem:[%s4] sm:$0xff]
    %v738 = vld [vmem:[%s4 + $0x8] sm:$0xff]
    %v739 = vld [vmem:[%s4 + $0x10] sm:$0xff]
    %v740 = vld [vmem:[%s4 + $0x18] sm:$0xff]
    %v741 = vld [vmem:[%s4 + $0x20] sm:$0xff]
    %v742 = vld [vmem:[%s4 + $0x28] sm:$0xff]
    %v743 = vld [vmem:[%s4 + $0x30] sm:$0xff]
    %v744 = vld [vmem:[%s4 + $0x38] sm:$0xff]
    %v745 = vld [vmem:[%s4 + $0x40] sm:$0xff]
    %v746 = vld [vmem:[%s4 + $0x48] sm:$0xff]
    %v747 = vld [vmem:[%s4 + $0x50] sm:$0xff]
    %v748 = vld [vmem:[%s4 + $0x58] sm:$0xff]
    %v749 = vld [vmem:[%s4 + $0x60] sm:$0xff]
    %v750 = vld [vmem:[%s4 + $0x68] sm:$0xff]
    %v751 = vld [vmem:[%s4 + $0x70] sm:$0xff]
    %v752 = vld [vmem:[%s4 + $0x78] sm:$0xff]
    %v753 = vld [vmem:[%s5] sm:$0x1]
    %v754 = vld [vmem:[%s6] sm:$0xff]
    %v755 = vld [vmem:[%s6 + $0x8] sm:$0xff]
    %v756 = vld [vmem:[%s6 + $0x10] sm:$0xff]
    %v757 = vld [vmem:[%s6 + $0x18] sm:$0xff]
    %v758 = vld [vmem:[%s6 + $0x20] sm:$0xff]
    %v759 = vld [vmem:[%s6 + $0x28] sm:$0xff]
    %v760 = vld [vmem:[%s6 + $0x30] sm:$0xff]
    %v761 = vld [vmem:[%s6 + $0x38] sm:$0xff]
    %v762 = vld [vmem:[%s7] sm:$0x1]
    %v764 = vlaneseq
    %v765 = vshrl.u32 %v764, 7
    %v766 = vsub.s32 0, %v765
    %v767 = vrot.slane %v753, %v766
    %769 = vmatprep.subr.mxu0 0.0
    %770 = vmatpush1.msra.mxu0 %v737
    %771 = vmatprep.subr.mxu0 0.0
    %772 = vmatpush1.msra.mxu0 %v738
    %773 = vmatprep.subr.mxu0 0.0
    %774 = vmatpush1.msra.mxu0 %v739
    %775 = vmatprep.subr.mxu0 0.0
    %776 = vmatpush1.msra.mxu0 %v740
    %777 = vmatprep.subr.mxu0 0.0
    %778 = vmatpush1.msra.mxu0 %v741
    %779 = vmatprep.subr.mxu0 0.0
    %780 = vmatpush1.msra.mxu0 %v742
    %781 = vmatprep.subr.mxu0 0.0
    %782 = vmatpush1.msra.mxu0 %v743
    %783 = vmatprep.subr.mxu0 0.0
    %784 = vmatpush1.msra.mxu0 %v744
    %785 = vmatprep.subr.mxu0 0.0
    %786 = vmatpush1.msra.mxu0 %v745
    %787 = vmatprep.subr.mxu0 0.0
    %788 = vmatpush1.msra.mxu0 %v746
    %789 = vmatprep.subr.mxu0 0.0
    %790 = vmatpush1.msra.mxu0 %v747
    %791 = vmatprep.subr.mxu0 0.0
    %792 = vmatpush1.msra.mxu0 %v748
    %793 = vmatprep.subr.mxu0 0.0
    %794 = vmatpush1.msra.mxu0 %v749
    %795 = vmatprep.subr.mxu0 0.0
    %796 = vmatpush1.msra.mxu0 %v750
    %797 = vmatprep.subr.mxu0 0.0
    %798 = vmatpush1.msra.mxu0 %v751
    %799 = vmatprep.subr.mxu0 0.0
    %800 = vmatpush1.msra.mxu0 %v752
    %801 = vmatprep.subr.mxu0 0.0
    %802 = vmatpush1.msra.mxu0 0.0
    %803 = vmatprep.subr.mxu0 0.0
    %804 = vmatpush1.msra.mxu0 0.0
    %805 = vmatprep.subr.mxu0 0.0
    %806 = vmatpush1.msra.mxu0 0.0
    %807 = vmatprep.subr.mxu0 0.0
    %808 = vmatpush1.msra.mxu0 0.0
    %809 = vmatprep.subr.mxu0 0.0
    %810 = vmatpush1.msra.mxu0 0.0
    %811 = vmatprep.subr.mxu0 0.0
    %812 = vmatpush1.msra.mxu0 0.0
    %813 = vmatprep.subr.mxu0 0.0
    %814 = vmatpush1.msra.mxu0 0.0
    %815 = vmatprep.subr.mxu0 0.0
    %816 = vmatpush1.msra.mxu0 0.0
    %817 = vmatprep.subr.mxu0 0.0
    %818 = vmatpush1.msra.mxu0 0.0
    %819 = vmatprep.subr.mxu0 0.0
    %820 = vmatpush1.msra.mxu0 0.0
    %821 = vmatprep.subr.mxu0 0.0
    %822 = vmatpush1.msra.mxu0 0.0
    %823 = vmatprep.subr.mxu0 0.0
    %824 = vmatpush1.msra.mxu0 0.0
    %825 = vmatprep.subr.mxu0 0.0
    %826 = vmatpush1.msra.mxu0 0.0
    %827 = vmatprep.subr.mxu0 0.0
    %828 = vmatpush1.msra.mxu0 0.0
    %829 = vmatprep.subr.mxu0 0.0
    %830 = vmatpush1.msra.mxu0 0.0
    %831 = vmatprep.subr.mxu0 0.0
    %832 = vmatpush1.msra.mxu0 0.0
    %833 = vmatprep.mubr.f32.mxu0 0.0
    %834 = vmatmul.mubr.f32.gmra.mrb[0].mxu0 %v734
    %v835 = vpop.f32.mrb[0].mxu0
    %v836 = vadd.f32 %v767, %v835
    %v837 = vpop.f32.mrb[0].mxu0
    %838 = vdwg.mxu0
    %v839 = vmax.f32 %v836, 0.0
    %v841 = vlaneseq
    %v842 = vshrl.u32 %v841, 7
    %v843 = vsub.s32 0, %v842
    %v844 = vrot.slane %v762, %v843
    %vm846 = vcmask 523264
    %v848 = vsel %vm846, %v839, 0
    %850 = vmatprep.subr.mxu0 0.0
    %851 = vmatpush1.msra.mxu0 %v754
    %852 = vmatprep.subr.mxu0 0.0
    %853 = vmatpush1.msra.mxu0 %v755
    %854 = vmatprep.subr.mxu0 0.0
    %855 = vmatpush1.msra.mxu0 %v756
    %856 = vmatprep.subr.mxu0 0.0
    %857 = vmatpush1.msra.mxu0 %v757
    %858 = vmatprep.subr.mxu0 0.0
    %859 = vmatpush1.msra.mxu0 %v758
    %860 = vmatprep.subr.mxu0 0.0
    %861 = vmatpush1.msra.mxu0 %v759
    %862 = vmatprep.subr.mxu0 0.0
    %863 = vmatpush1.msra.mxu0 %v760
    %864 = vmatprep.subr.mxu0 0.0
    %865 = vmatpush1.msra.mxu0 %v761
    %866 = vmatprep.subr.mxu0 0.0
    %867 = vmatpush1.msra.mxu0 0.0
    %868 = vmatprep.subr.mxu0 0.0
    %869 = vmatpush1.msra.mxu0 0.0
    %870 = vmatprep.subr.mxu0 0.0
    %871 = vmatpush1.msra.mxu0 0.0
    %872 = vmatprep.subr.mxu0 0.0
    %873 = vmatpush1.msra.mxu0 0.0
    %874 = vmatprep.subr.mxu0 0.0
    %875 = vmatpush1.msra.mxu0 0.0
    %876 = vmatprep.subr.mxu0 0.0
    %877 = vmatpush1.msra.mxu0 0.0
    %878 = vmatprep.subr.mxu0 0.0
    %879 = vmatpush1.msra.mxu0 0.0
    %880 = vmatprep.subr.mxu0 0.0
    %881 = vmatpush1.msra.mxu0 0.0
    %882 = vmatprep.subr.mxu0 0.0
    %883 = vmatpush1.msra.mxu0 0.0
    %884 = vmatprep.subr.mxu0 0.0
    %885 = vmatpush1.msra.mxu0 0.0
    %886 = vmatprep.subr.mxu0 0.0
    %887 = vmatpush1.msra.mxu0 0.0
    %888 = vmatprep.subr.mxu0 0.0
    %889 = vmatpush1.msra.mxu0 0.0
    %890 = vmatprep.subr.mxu0 0.0
    %891 = vmatpush1.msra.mxu0 0.0
    %892 = vmatprep.subr.mxu0 0.0
    %893 = vmatpush1.msra.mxu0 0.0
    %894 = vmatprep.subr.mxu0 0.0
    %895 = vmatpush1.msra.mxu0 0.0
    %896 = vmatprep.subr.mxu0 0.0
    %897 = vmatpush1.msra.mxu0 0.0
    %898 = vmatprep.subr.mxu0 0.0
    %899 = vmatpush1.msra.mxu0 0.0
    %900 = vmatprep.subr.mxu0 0.0
    %901 = vmatpush1.msra.mxu0 0.0
    %902 = vmatprep.subr.mxu0 0.0
    %903 = vmatpush1.msra.mxu0 0.0
    %904 = vmatprep.subr.mxu0 0.0
    %905 = vmatpush1.msra.mxu0 0.0
    %906 = vmatprep.subr.mxu0 0.0
    %907 = vmatpush1.msra.mxu0 0.0
    %908 = vmatprep.subr.mxu0 0.0
    %909 = vmatpush1.msra.mxu0 0.0
    %910 = vmatprep.subr.mxu0 0.0
    %911 = vmatpush1.msra.mxu0 0.0
    %912 = vmatprep.subr.mxu0 0.0
    %913 = vmatpush1.msra.mxu0 0.0
    %914 = vmatprep.mubr.f32.mxu0 0.0
    %915 = vmatmul.mubr.f32.gmra.mrb[0].mxu0 %v848
    %v916 = vpop.f32.mrb[0].mxu0
    %v917 = vadd.f32 %v844, %v916
    %v918 = vpop.f32.mrb[0].mxu0
    %919 = vdwg.mxu0
    %v920 = vmax.f32 %v917, 0.0
    %v921 = vand.u32 2147483647, %v917
    %v922 = vsub.f32 0.0, %v921
    %v923 = vmul.f32 %v922, 1.442695
    %v924 = vpow.pop %v923
    %v925 = vadd.f32 %v924, 1.0
    %v926 = vlog2.pop %v925
    %v927 = vmul.f32 %v926, 0.6931472
    %v928 = vmul.f32 -0.5, %v924
    %v929 = vadd.f32 %v928, 1.0
    %v930 = vmul.f32 %v929, %v924
    %v931 = vand.u32 2147483647, %v924
    %vm932 = vcmp.lt.f32.partialorder %v931, 0.0004427343
    %v933 = vsel %vm932, %v930, %v927
    %v934 = vadd.f32 %v920, %v933
    %v935 = vsel %vm38, 1, 0
    %vm936 = vcmp.eq.s32.totalorder %v935, 1
    %v937 = vsel %vm936, %v934, 0.0
    %v938 = vadd.f32 %v937, 1.0
    %s939 = scalar_lea.vmem %s4, 128
    %v940 = vld [vmem:[%s939] sm:$0xff]
    %v941 = vld [vmem:[%s939 + $0x8] sm:$0xff]
    %v942 = vld [vmem:[%s939 + $0x10] sm:$0xff]
    %v943 = vld [vmem:[%s939 + $0x18] sm:$0xff]
    %v944 = vld [vmem:[%s939 + $0x20] sm:$0xff]
    %v945 = vld [vmem:[%s939 + $0x28] sm:$0xff]
    %v946 = vld [vmem:[%s939 + $0x30] sm:$0xff]
    %v947 = vld [vmem:[%s939 + $0x38] sm:$0xff]
    %v948 = vld [vmem:[%s939 + $0x40] sm:$0xff]
    %v949 = vld [vmem:[%s939 + $0x48] sm:$0xff]
    %v950 = vld [vmem:[%s939 + $0x50] sm:$0xff]
    %v951 = vld [vmem:[%s939 + $0x58] sm:$0xff]
    %v952 = vld [vmem:[%s939 + $0x60] sm:$0xff]
    %v953 = vld [vmem:[%s939 + $0x68] sm:$0xff]
    %v954 = vld [vmem:[%s939 + $0x70] sm:$0xff]
    %v955 = vld [vmem:[%s939 + $0x78] sm:$0xff]
    %s956 = scalar_lea.vmem %s5, 1
    %v957 = vld [vmem:[%s956] sm:$0x1]
    %s958 = scalar_lea.vmem %s6, 64
    %v959 = vld [vmem:[%s958] sm:$0xff]
    %v960 = vld [vmem:[%s958 + $0x8] sm:$0xff]
    %v961 = vld [vmem:[%s958 + $0x10] sm:$0xff]
    %v962 = vld [vmem:[%s958 + $0x18] sm:$0xff]
    %v963 = vld [vmem:[%s958 + $0x20] sm:$0xff]
    %v964 = vld [vmem:[%s958 + $0x28] sm:$0xff]
    %v965 = vld [vmem:[%s958 + $0x30] sm:$0xff]
    %v966 = vld [vmem:[%s958 + $0x38] sm:$0xff]
    %s967 = scalar_lea.vmem %s7, 1
    %v968 = vld [vmem:[%s967] sm:$0x1]
    %v970 = vlaneseq
    %v971 = vshrl.u32 %v970, 7
    %v972 = vsub.s32 0, %v971
    %v973 = vrot.slane %v957, %v972
    %975 = vmatprep.subr.mxu0 0.0
    %976 = vmatpush1.msra.mxu0 %v940
    %977 = vmatprep.subr.mxu0 0.0
    %978 = vmatpush1.msra.mxu0 %v941
    %979 = vmatprep.subr.mxu0 0.0
    %980 = vmatpush1.msra.mxu0 %v942
    %981 = vmatprep.subr.mxu0 0.0
    %982 = vmatpush1.msra.mxu0 %v943
    %983 = vmatprep.subr.mxu0 0.0
    %984 = vmatpush1.msra.mxu0 %v944
    %985 = vmatprep.subr.mxu0 0.0
    %986 = vmatpush1.msra.mxu0 %v945
    %987 = vmatprep.subr.mxu0 0.0
    %988 = vmatpush1.msra.mxu0 %v946
    %989 = vmatprep.subr.mxu0 0.0
    %990 = vmatpush1.msra.mxu0 %v947
    %991 = vmatprep.subr.mxu0 0.0
    %992 = vmatpush1.msra.mxu0 %v948
    %993 = vmatprep.subr.mxu0 0.0
    %994 = vmatpush1.msra.mxu0 %v949
    %995 = vmatprep.subr.mxu0 0.0
    %996 = vmatpush1.msra.mxu0 %v950
    %997 = vmatprep.subr.mxu0 0.0
    %998 = vmatpush1.msra.mxu0 %v951
    %999 = vmatprep.subr.mxu0 0.0
    %1000 = vmatpush1.msra.mxu0 %v952
    %1001 = vmatprep.subr.mxu0 0.0
    %1002 = vmatpush1.msra.mxu0 %v953
    %1003 = vmatprep.subr.mxu0 0.0
    %1004 = vmatpush1.msra.mxu0 %v954
    %1005 = vmatprep.subr.mxu0 0.0
    %1006 = vmatpush1.msra.mxu0 %v955
    %1007 = vmatprep.subr.mxu0 0.0
    %1008 = vmatpush1.msra.mxu0 0.0
    %1009 = vmatprep.subr.mxu0 0.0
    %1010 = vmatpush1.msra.mxu0 0.0
    %1011 = vmatprep.subr.mxu0 0.0
    %1012 = vmatpush1.msra.mxu0 0.0
    %1013 = vmatprep.subr.mxu0 0.0
    %1014 = vmatpush1.msra.mxu0 0.0
    %1015 = vmatprep.subr.mxu0 0.0
    %1016 = vmatpush1.msra.mxu0 0.0
    %1017 = vmatprep.subr.mxu0 0.0
    %1018 = vmatpush1.msra.mxu0 0.0
    %1019 = vmatprep.subr.mxu0 0.0
    %1020 = vmatpush1.msra.mxu0 0.0
    %1021 = vmatprep.subr.mxu0 0.0
    %1022 = vmatpush1.msra.mxu0 0.0
    %1023 = vmatprep.subr.mxu0 0.0
    %1024 = vmatpush1.msra.mxu0 0.0
    %1025 = vmatprep.subr.mxu0 0.0
    %1026 = vmatpush1.msra.mxu0 0.0
    %1027 = vmatprep.subr.mxu0 0.0
    %1028 = vmatpush1.msra.mxu0 0.0
    %1029 = vmatprep.subr.mxu0 0.0
    %1030 = vmatpush1.msra.mxu0 0.0
    %1031 = vmatprep.subr.mxu0 0.0
    %1032 = vmatpush1.msra.mxu0 0.0
    %1033 = vmatprep.subr.mxu0 0.0
    %1034 = vmatpush1.msra.mxu0 0.0
    %1035 = vmatprep.subr.mxu0 0.0
    %1036 = vmatpush1.msra.mxu0 0.0
    %1037 = vmatprep.subr.mxu0 0.0
    %1038 = vmatpush1.msra.mxu0 0.0
    %1039 = vmatprep.mubr.f32.mxu0 0.0
    %1040 = vmatmul.mubr.f32.gmra.mrb[0].mxu0 %v384
    %v1041 = vpop.f32.mrb[0].mxu0
    %v1042 = vadd.f32 %v973, %v1041
    %v1043 = vpop.f32.mrb[0].mxu0
    %1044 = vdwg.mxu0
    %v1045 = vmax.f32 %v1042, 0.0
    %v1047 = vlaneseq
    %v1048 = vshrl.u32 %v1047, 7
    %v1049 = vsub.s32 0, %v1048
    %v1050 = vrot.slane %v968, %v1049
    %v1053 = vsel %vm846, %v1045, 0
    %1055 = vmatprep.subr.mxu0 0.0
    %1056 = vmatpush1.msra.mxu0 %v959
    %1057 = vmatprep.subr.mxu0 0.0
    %1058 = vmatpush1.msra.mxu0 %v960
    %1059 = vmatprep.subr.mxu0 0.0
    %1060 = vmatpush1.msra.mxu0 %v961
    %1061 = vmatprep.subr.mxu0 0.0
    %1062 = vmatpush1.msra.mxu0 %v962
    %1063 = vmatprep.subr.mxu0 0.0
    %1064 = vmatpush1.msra.mxu0 %v963
    %1065 = vmatprep.subr.mxu0 0.0
    %1066 = vmatpush1.msra.mxu0 %v964
    %1067 = vmatprep.subr.mxu0 0.0
    %1068 = vmatpush1.msra.mxu0 %v965
    %1069 = vmatprep.subr.mxu0 0.0
    %1070 = vmatpush1.msra.mxu0 %v966
    %1071 = vmatprep.subr.mxu0 0.0
    %1072 = vmatpush1.msra.mxu0 0.0
    %1073 = vmatprep.subr.mxu0 0.0
    %1074 = vmatpush1.msra.mxu0 0.0
    %1075 = vmatprep.subr.mxu0 0.0
    %1076 = vmatpush1.msra.mxu0 0.0
    %1077 = vmatprep.subr.mxu0 0.0
    %1078 = vmatpush1.msra.mxu0 0.0
    %1079 = vmatprep.subr.mxu0 0.0
    %1080 = vmatpush1.msra.mxu0 0.0
    %1081 = vmatprep.subr.mxu0 0.0
    %1082 = vmatpush1.msra.mxu0 0.0
    %1083 = vmatprep.subr.mxu0 0.0
    %1084 = vmatpush1.msra.mxu0 0.0
    %1085 = vmatprep.subr.mxu0 0.0
    %1086 = vmatpush1.msra.mxu0 0.0
    %1087 = vmatprep.subr.mxu0 0.0
    %1088 = vmatpush1.msra.mxu0 0.0
    %1089 = vmatprep.subr.mxu0 0.0
    %1090 = vmatpush1.msra.mxu0 0.0
    %1091 = vmatprep.subr.mxu0 0.0
    %1092 = vmatpush1.msra.mxu0 0.0
    %1093 = vmatprep.subr.mxu0 0.0
    %1094 = vmatpush1.msra.mxu0 0.0
    %1095 = vmatprep.subr.mxu0 0.0
    %1096 = vmatpush1.msra.mxu0 0.0
    %1097 = vmatprep.subr.mxu0 0.0
    %1098 = vmatpush1.msra.mxu0 0.0
    %1099 = vmatprep.subr.mxu0 0.0
    %1100 = vmatpush1.msra.mxu0 0.0
    %1101 = vmatprep.subr.mxu0 0.0
    %1102 = vmatpush1.msra.mxu0 0.0
    %1103 = vmatprep.subr.mxu0 0.0
    %1104 = vmatpush1.msra.mxu0 0.0
    %1105 = vmatprep.subr.mxu0 0.0
    %1106 = vmatpush1.msra.mxu0 0.0
    %1107 = vmatprep.subr.mxu0 0.0
    %1108 = vmatpush1.msra.mxu0 0.0
    %1109 = vmatprep.subr.mxu0 0.0
    %1110 = vmatpush1.msra.mxu0 0.0
    %1111 = vmatprep.subr.mxu0 0.0
    %1112 = vmatpush1.msra.mxu0 0.0
    %1113 = vmatprep.subr.mxu0 0.0
    %1114 = vmatpush1.msra.mxu0 0.0
    %1115 = vmatprep.subr.mxu0 0.0
    %1116 = vmatpush1.msra.mxu0 0.0
    %1117 = vmatprep.subr.mxu0 0.0
    %1118 = vmatpush1.msra.mxu0 0.0
    %1119 = vmatprep.mubr.f32.mxu0 0.0
    %1120 = vmatmul.mubr.f32.gmra.mrb[0].mxu0 %v1053
    %v1121 = vpop.f32.mrb[0].mxu0
    %v1122 = vadd.f32 %v1050, %v1121
    %v1123 = vpop.f32.mrb[0].mxu0
    %1124 = vdwg.mxu0
    %v1125 = vmax.f32 %v1122, 0.0
    %v1126 = vand.u32 2147483647, %v1122
    %v1127 = vsub.f32 0.0, %v1126
    %v1128 = vmul.f32 %v1127, 1.442695
    %v1129 = vpow.pop %v1128
    %v1130 = vadd.f32 %v1129, 1.0
    %v1131 = vlog2.pop %v1130
    %v1132 = vmul.f32 %v1131, 0.6931472
    %v1133 = vmul.f32 -0.5, %v1129
    %v1134 = vadd.f32 %v1133, 1.0
    %v1135 = vmul.f32 %v1134, %v1129
    %v1136 = vand.u32 2147483647, %v1129
    %vm1137 = vcmp.lt.f32.partialorder %v1136, 0.0004427343
    %v1138 = vsel %vm1137, %v1135, %v1132
    %v1139 = vadd.f32 %v1125, %v1138
    %v1140 = vsel %vm936, %v1139, 0.0
    %v1141 = vadd.f32 %v1140, 1.0
    %s1142 = scalar_lea.vmem %s4, 256
    %v1143 = vld [vmem:[%s1142] sm:$0xff]
    %v1144 = vld [vmem:[%s1142 + $0x8] sm:$0xff]
    %v1145 = vld [vmem:[%s1142 + $0x10] sm:$0xff]
    %v1146 = vld [vmem:[%s1142 + $0x18] sm:$0xff]
    %v1147 = vld [vmem:[%s1142 + $0x20] sm:$0xff]
    %v1148 = vld [vmem:[%s1142 + $0x28] sm:$0xff]
    %v1149 = vld [vmem:[%s1142 + $0x30] sm:$0xff]
    %v1150 = vld [vmem:[%s1142 + $0x38] sm:$0xff]
    %v1151 = vld [vmem:[%s1142 + $0x40] sm:$0xff]
    %v1152 = vld [vmem:[%s1142 + $0x48] sm:$0xff]
    %v1153 = vld [vmem:[%s1142 + $0x50] sm:$0xff]
    %v1154 = vld [vmem:[%s1142 + $0x58] sm:$0xff]
    %v1155 = vld [vmem:[%s1142 + $0x60] sm:$0xff]
    %v1156 = vld [vmem:[%s1142 + $0x68] sm:$0xff]
    %v1157 = vld [vmem:[%s1142 + $0x70] sm:$0xff]
    %v1158 = vld [vmem:[%s1142 + $0x78] sm:$0xff]
    %s1159 = scalar_lea.vmem %s4, 384
    %v1160 = vld [vmem:[%s1159] sm:$0xff]
    %v1161 = vld [vmem:[%s1159 + $0x8] sm:$0xff]
    %v1162 = vld [vmem:[%s1159 + $0x10] sm:$0xff]
    %v1163 = vld [vmem:[%s1159 + $0x18] sm:$0xff]
    %v1164 = vld [vmem:[%s1159 + $0x20] sm:$0xff]
    %v1165 = vld [vmem:[%s1159 + $0x28] sm:$0xff]
    %v1166 = vld [vmem:[%s1159 + $0x30] sm:$0xff]
    %v1167 = vld [vmem:[%s1159 + $0x38] sm:$0xff]
    %v1168 = vld [vmem:[%s1159 + $0x40] sm:$0xff]
    %v1169 = vld [vmem:[%s1159 + $0x48] sm:$0xff]
    %v1170 = vld [vmem:[%s1159 + $0x50] sm:$0xff]
    %v1171 = vld [vmem:[%s1159 + $0x58] sm:$0xff]
    %v1172 = vld [vmem:[%s1159 + $0x60] sm:$0xff]
    %v1173 = vld [vmem:[%s1159 + $0x68] sm:$0xff]
    %v1174 = vld [vmem:[%s1159 + $0x70] sm:$0xff]
    %v1175 = vld [vmem:[%s1159 + $0x78] sm:$0xff]
    %1176 = vmatprep.subr.mxu0 0.0
    %1177 = vmatpush1.msra.mxu0 %v1160
    %1178 = vmatprep.subr.mxu0 0.0
    %1179 = vmatpush1.msra.mxu0 %v1161
    %1180 = vmatprep.subr.mxu0 0.0
    %1181 = vmatpush1.msra.mxu0 %v1162
    %1182 = vmatprep.subr.mxu0 0.0
    %1183 = vmatpush1.msra.mxu0 %v1163
    %1184 = vmatprep.subr.mxu0 0.0
    %1185 = vmatpush1.msra.mxu0 %v1164
    %1186 = vmatprep.subr.mxu0 0.0
    %1187 = vmatpush1.msra.mxu0 %v1165
    %1188 = vmatprep.subr.mxu0 0.0
    %1189 = vmatpush1.msra.mxu0 %v1166
    %1190 = vmatprep.subr.mxu0 0.0
    %1191 = vmatpush1.msra.mxu0 %v1167
    %1192 = vmatprep.subr.mxu0 0.0
    %1193 = vmatpush1.msra.mxu0 %v1168
    %1194 = vmatprep.subr.mxu0 0.0
    %1195 = vmatpush1.msra.mxu0 %v1169
    %1196 = vmatprep.subr.mxu0 0.0
    %1197 = vmatpush1.msra.mxu0 %v1170
    %1198 = vmatprep.subr.mxu0 0.0
    %1199 = vmatpush1.msra.mxu0 %v1171
    %1200 = vmatprep.subr.mxu0 0.0
    %1201 = vmatpush1.msra.mxu0 %v1172
    %1202 = vmatprep.subr.mxu0 0.0
    %1203 = vmatpush1.msra.mxu0 %v1173
    %1204 = vmatprep.subr.mxu0 0.0
    %1205 = vmatpush1.msra.mxu0 %v1174
    %1206 = vmatprep.subr.mxu0 0.0
    %1207 = vmatpush1.msra.mxu0 %v1175
    %1208 = vmatprep.subr.mxu0 0.0
    %1209 = vmatpush1.msra.mxu0 0.0
    %1210 = vmatprep.subr.mxu0 0.0
    %1211 = vmatpush1.msra.mxu0 0.0
    %1212 = vmatprep.subr.mxu0 0.0
    %1213 = vmatpush1.msra.mxu0 0.0
    %1214 = vmatprep.subr.mxu0 0.0
    %1215 = vmatpush1.msra.mxu0 0.0
    %1216 = vmatprep.subr.mxu0 0.0
    %1217 = vmatpush1.msra.mxu0 0.0
    %1218 = vmatprep.subr.mxu0 0.0
    %1219 = vmatpush1.msra.mxu0 0.0
    %1220 = vmatprep.subr.mxu0 0.0
    %1221 = vmatpush1.msra.mxu0 0.0
    %1222 = vmatprep.subr.mxu0 0.0
    %1223 = vmatpush1.msra.mxu0 0.0
    %1224 = vmatprep.subr.mxu0 0.0
    %1225 = vmatpush1.msra.mxu0 0.0
    %1226 = vmatprep.subr.mxu0 0.0
    %1227 = vmatpush1.msra.mxu0 0.0
    %1228 = vmatprep.subr.mxu0 0.0
    %1229 = vmatpush1.msra.mxu0 0.0
    %1230 = vmatprep.subr.mxu0 0.0
    %1231 = vmatpush1.msra.mxu0 0.0
    %1232 = vmatprep.subr.mxu0 0.0
    %1233 = vmatpush1.msra.mxu0 0.0
    %1234 = vmatprep.subr.mxu0 0.0
    %1235 = vmatpush1.msra.mxu0 0.0
    %1236 = vmatprep.subr.mxu0 0.0
    %1237 = vmatpush1.msra.mxu0 0.0
    %1238 = vmatprep.subr.mxu0 0.0
    %1239 = vmatpush1.msra.mxu0 0.0
    %1240 = vmatprep.mubr.f32.mxu0 0.0
    %1241 = vmatmul.mubr.f32.gmra.mrb[0].mxu0 %v734
    %v1242 = vpop.f32.mrb[0].mxu0
    %v1243 = vadd.f32 0.0, %v1242
    %v1244 = vpop.f32.mrb[0].mxu0
    %1245 = vdwg.mxu0
    %1246 = vmatprep.subr.mxu0 0.0
    %1247 = vmatpush1.msra.mxu0 %v1143
    %1248 = vmatprep.subr.mxu0 0.0
    %1249 = vmatpush1.msra.mxu0 %v1144
    %1250 = vmatprep.subr.mxu0 0.0
    %1251 = vmatpush1.msra.mxu0 %v1145
    %1252 = vmatprep.subr.mxu0 0.0
    %1253 = vmatpush1.msra.mxu0 %v1146
    %1254 = vmatprep.subr.mxu0 0.0
    %1255 = vmatpush1.msra.mxu0 %v1147
    %1256 = vmatprep.subr.mxu0 0.0
    %1257 = vmatpush1.msra.mxu0 %v1148
    %1258 = vmatprep.subr.mxu0 0.0
    %1259 = vmatpush1.msra.mxu0 %v1149
    %1260 = vmatprep.subr.mxu0 0.0
    %1261 = vmatpush1.msra.mxu0 %v1150
    %1262 = vmatprep.subr.mxu0 0.0
    %1263 = vmatpush1.msra.mxu0 %v1151
    %1264 = vmatprep.subr.mxu0 0.0
    %1265 = vmatpush1.msra.mxu0 %v1152
    %1266 = vmatprep.subr.mxu0 0.0
    %1267 = vmatpush1.msra.mxu0 %v1153
    %1268 = vmatprep.subr.mxu0 0.0
    %1269 = vmatpush1.msra.mxu0 %v1154
    %1270 = vmatprep.subr.mxu0 0.0
    %1271 = vmatpush1.msra.mxu0 %v1155
    %1272 = vmatprep.subr.mxu0 0.0
    %1273 = vmatpush1.msra.mxu0 %v1156
    %1274 = vmatprep.subr.mxu0 0.0
    %1275 = vmatpush1.msra.mxu0 %v1157
    %1276 = vmatprep.subr.mxu0 0.0
    %1277 = vmatpush1.msra.mxu0 %v1158
    %1278 = vmatprep.subr.mxu0 0.0
    %1279 = vmatpush1.msra.mxu0 0.0
    %1280 = vmatprep.subr.mxu0 0.0
    %1281 = vmatpush1.msra.mxu0 0.0
    %1282 = vmatprep.subr.mxu0 0.0
    %1283 = vmatpush1.msra.mxu0 0.0
    %1284 = vmatprep.subr.mxu0 0.0
    %1285 = vmatpush1.msra.mxu0 0.0
    %1286 = vmatprep.subr.mxu0 0.0
    %1287 = vmatpush1.msra.mxu0 0.0
    %1288 = vmatprep.subr.mxu0 0.0
    %1289 = vmatpush1.msra.mxu0 0.0
    %1290 = vmatprep.subr.mxu0 0.0
    %1291 = vmatpush1.msra.mxu0 0.0
    %1292 = vmatprep.subr.mxu0 0.0
    %1293 = vmatpush1.msra.mxu0 0.0
    %1294 = vmatprep.subr.mxu0 0.0
    %1295 = vmatpush1.msra.mxu0 0.0
    %1296 = vmatprep.subr.mxu0 0.0
    %1297 = vmatpush1.msra.mxu0 0.0
    %1298 = vmatprep.subr.mxu0 0.0
    %1299 = vmatpush1.msra.mxu0 0.0
    %1300 = vmatprep.subr.mxu0 0.0
    %1301 = vmatpush1.msra.mxu0 0.0
    %1302 = vmatprep.subr.mxu0 0.0
    %1303 = vmatpush1.msra.mxu0 0.0
    %1304 = vmatprep.subr.mxu0 0.0
    %1305 = vmatpush1.msra.mxu0 0.0
    %1306 = vmatprep.subr.mxu0 0.0
    %1307 = vmatpush1.msra.mxu0 0.0
    %1308 = vmatprep.subr.mxu0 0.0
    %1309 = vmatpush1.msra.mxu0 0.0
    %1310 = vmatprep.mubr.f32.mxu0 0.0
    %1311 = vmatmul.mubr.f32.gmra.mrb[0].mxu0 %v384
    %v1312 = vpop.f32.mrb[0].mxu0
    %v1313 = vadd.f32 %v1243, %v1312
    %v1314 = vpop.f32.mrb[0].mxu0
    %1315 = vdwg.mxu0
    %s1316 = scalar_lea.vmem %s5, 2
    %v1317 = vld [vmem:[%s1316] sm:$0x1]
    %v1319 = vlaneseq
    %v1320 = vshrl.u32 %v1319, 7
    %v1321 = vsub.s32 0, %v1320
    %v1322 = vrot.slane %v1317, %v1321
    %v1324 = vadd.f32 %v1313, %v1322
    %v1325 = vmax.f32 %v1324, 0.0
    %s1326 = scalar_lea.vmem %s6, 128
    %v1327 = vld [vmem:[%s1326] sm:$0xff]
    %v1328 = vld [vmem:[%s1326 + $0x8] sm:$0xff]
    %v1329 = vld [vmem:[%s1326 + $0x10] sm:$0xff]
    %v1330 = vld [vmem:[%s1326 + $0x18] sm:$0xff]
    %v1331 = vld [vmem:[%s1326 + $0x20] sm:$0xff]
    %v1332 = vld [vmem:[%s1326 + $0x28] sm:$0xff]
    %v1333 = vld [vmem:[%s1326 + $0x30] sm:$0xff]
    %v1334 = vld [vmem:[%s1326 + $0x38] sm:$0xff]
    %s1335 = scalar_lea.vmem %s7, 2
    %v1336 = vld [vmem:[%s1335] sm:$0x1]
    %v1338 = vlaneseq
    %v1339 = vshrl.u32 %v1338, 7
    %v1340 = vsub.s32 0, %v1339
    %v1341 = vrot.slane %v1336, %v1340
    %v1344 = vsel %vm846, %v1325, 0
    %1346 = vmatprep.subr.mxu0 0.0
    %1347 = vmatpush1.msra.mxu0 %v1327
    %1348 = vmatprep.subr.mxu0 0.0
    %1349 = vmatpush1.msra.mxu0 %v1328
    %1350 = vmatprep.subr.mxu0 0.0
    %1351 = vmatpush1.msra.mxu0 %v1329
    %1352 = vmatprep.subr.mxu0 0.0
    %1353 = vmatpush1.msra.mxu0 %v1330
    %1354 = vmatprep.subr.mxu0 0.0
    %1355 = vmatpush1.msra.mxu0 %v1331
    %1356 = vmatprep.subr.mxu0 0.0
    %1357 = vmatpush1.msra.mxu0 %v1332
    %1358 = vmatprep.subr.mxu0 0.0
    %1359 = vmatpush1.msra.mxu0 %v1333
    %1360 = vmatprep.subr.mxu0 0.0
    %1361 = vmatpush1.msra.mxu0 %v1334
    %1362 = vmatprep.subr.mxu0 0.0
    %1363 = vmatpush1.msra.mxu0 0.0
    %1364 = vmatprep.subr.mxu0 0.0
    %1365 = vmatpush1.msra.mxu0 0.0
    %1366 = vmatprep.subr.mxu0 0.0
    %1367 = vmatpush1.msra.mxu0 0.0
    %1368 = vmatprep.subr.mxu0 0.0
    %1369 = vmatpush1.msra.mxu0 0.0
    %1370 = vmatprep.subr.mxu0 0.0
    %1371 = vmatpush1.msra.mxu0 0.0
    %1372 = vmatprep.subr.mxu0 0.0
    %1373 = vmatpush1.msra.mxu0 0.0
    %1374 = vmatprep.subr.mxu0 0.0
    %1375 = vmatpush1.msra.mxu0 0.0
    %1376 = vmatprep.subr.mxu0 0.0
    %1377 = vmatpush1.msra.mxu0 0.0
    %1378 = vmatprep.subr.mxu0 0.0
    %1379 = vmatpush1.msra.mxu0 0.0
    %1380 = vmatprep.subr.mxu0 0.0
    %1381 = vmatpush1.msra.mxu0 0.0
    %1382 = vmatprep.subr.mxu0 0.0
    %1383 = vmatpush1.msra.mxu0 0.0
    %1384 = vmatprep.subr.mxu0 0.0
    %1385 = vmatpush1.msra.mxu0 0.0
    %1386 = vmatprep.subr.mxu0 0.0
    %1387 = vmatpush1.msra.mxu0 0.0
    %1388 = vmatprep.subr.mxu0 0.0
    %1389 = vmatpush1.msra.mxu0 0.0
    %1390 = vmatprep.subr.mxu0 0.0
    %1391 = vmatpush1.msra.mxu0 0.0
    %1392 = vmatprep.subr.mxu0 0.0
    %1393 = vmatpush1.msra.mxu0 0.0
    %1394 = vmatprep.subr.mxu0 0.0
    %1395 = vmatpush1.msra.mxu0 0.0
    %1396 = vmatprep.subr.mxu0 0.0
    %1397 = vmatpush1.msra.mxu0 0.0
    %1398 = vmatprep.subr.mxu0 0.0
    %1399 = vmatpush1.msra.mxu0 0.0
    %1400 = vmatprep.subr.mxu0 0.0
    %1401 = vmatpush1.msra.mxu0 0.0
    %1402 = vmatprep.subr.mxu0 0.0
    %1403 = vmatpush1.msra.mxu0 0.0
    %1404 = vmatprep.subr.mxu0 0.0
    %1405 = vmatpush1.msra.mxu0 0.0
    %1406 = vmatprep.subr.mxu0 0.0
    %1407 = vmatpush1.msra.mxu0 0.0
    %1408 = vmatprep.subr.mxu0 0.0
    %1409 = vmatpush1.msra.mxu0 0.0
    %1410 = vmatprep.mubr.f32.mxu0 0.0
    %1411 = vmatmul.mubr.f32.gmra.mrb[0].mxu0 %v1344
    %v1412 = vpop.f32.mrb[0].mxu0
    %v1413 = vadd.f32 %v1341, %v1412
    %v1414 = vpop.f32.mrb[0].mxu0
    %1415 = vdwg.mxu0
    %v1416 = vmax.f32 %v1413, 0.0
    %v1417 = vand.u32 2147483647, %v1413
    %v1418 = vsub.f32 0.0, %v1417
    %v1419 = vmul.f32 %v1418, 1.442695
    %v1420 = vpow.pop %v1419
    %v1421 = vadd.f32 %v1420, 1.0
    %v1422 = vlog2.pop %v1421
    %v1423 = vmul.f32 %v1422, 0.6931472
    %v1424 = vmul.f32 -0.5, %v1420
    %v1425 = vadd.f32 %v1424, 1.0
    %v1426 = vmul.f32 %v1425, %v1420
    %v1427 = vand.u32 2147483647, %v1420
    %vm1428 = vcmp.lt.f32.partialorder %v1427, 0.0004427343
    %v1429 = vsel %vm1428, %v1426, %v1423
    %v1430 = vadd.f32 %v1416, %v1429
    %v1431 = vsel %vm936, %v1430, 0.0
    %v1432 = vadd.f32 %v1431, 1.0
    %v1433 = vsel %vm936, %v938, 0.0
    %vm1434 = vcmask 1041408
    %v1435 = vsel %vm1434, %v1433, 0.0
    %1436 = vadd.xlane.f32.xlu0 %v1435
    %v1437 = vpop.xlane.xlu0 %1436
    %v1438 = vsel %vm936, %v1141, 0.0
    %v1439 = vsel %vm1434, %v1438, 0.0
    %1440 = vadd.xlane.f32.xlu0 %v1439
    %v1441 = vpop.xlane.xlu0 %1440
    %v1442 = vsub.f32 %v938, 1.0
    %v1443 = vrcp.pop %v1437
    %v1444 = vmul.f32 %v1442, %v1443
    %v1445 = vsub.f32 %v1141, 1.0
    %v1446 = vrcp.pop %v1441
    %v1447 = vmul.f32 %v1445, %v1446
    %v1448 = vmul.f32 8.0, %v1443
    %v1449 = vmul.f32 8.0, %v1446
    %v1450 = vsel %vm1434, %v1444, 0.0
    %1451 = vadd.xlane.f32.xlu0 %v1450
    %v1452 = vpop.xlane.xlu0 %1451
    %v1453 = vsel %vm1434, %v1447, 0.0
    %1454 = vadd.xlane.f32.xlu0 %v1453
    %v1455 = vpop.xlane.xlu0 %1454
    %v1456 = vmul.f32 %v1452, %v1455
    %v1457 = vmul.f32 %v1444, %v1447
    %v1458 = vsel %vm1434, %v1457, 0.0
    %1459 = vadd.xlane.f32.xlu0 %v1458
    %v1460 = vpop.xlane.xlu0 %1459
    %v1461 = vsub.f32 %v1456, %v1460
    %v1462 = vsub.f32 1.0, %v1461
    %v1463 = vmul.f32 %v1444, %v1449
    %v1464 = vadd.f32 %v1457, %v1463
    %v1465 = vmul.f32 %v1447, %v1448
    %v1466 = vadd.f32 %v1464, %v1465
    %v1467 = vrcp.pop %v1462
    %v1468 = vmul.f32 %v1466, %v1467
    %v1469 = vmul.f32 %v1448, %v1449
    %v1470 = vmul.f32 %v1469, %v1467
    %v1471 = vrcp.pop %v1470
    %v1472 = vmul.f32 8.0, %v1471
    %v1473 = vmul.f32 %v1468, %v1472
    %v1474 = vsel %vm936, %v1473, 0.0
    %v1475 = vadd.f32 %v1474, 1.0
    %v1476 = vsel %vm936, %v1475, 0.0
    %v1477 = vsel %vm1434, %v1476, 0.0
    %1478 = vadd.xlane.f32.xlu0 %v1477
    %v1479 = vpop.xlane.xlu0 %1478
    %v1480 = vsel %vm936, %v1432, 0.0
    %v1481 = vsel %vm1434, %v1480, 0.0
    %1482 = vadd.xlane.f32.xlu0 %v1481
    %v1483 = vpop.xlane.xlu0 %1482
    %v1484 = vsub.f32 %v1475, 1.0
    %v1485 = vrcp.pop %v1479
    %v1486 = vmul.f32 %v1484, %v1485
    %v1487 = vsub.f32 %v1432, 1.0
    %v1488 = vrcp.pop %v1483
    %v1489 = vmul.f32 %v1487, %v1488
    %v1490 = vmul.f32 8.0, %v1485
    %v1491 = vmul.f32 8.0, %v1488
    %v1492 = vsel %vm1434, %v1486, 0.0
    %1493 = vadd.xlane.f32.xlu0 %v1492
    %v1494 = vpop.xlane.xlu0 %1493
    %v1495 = vsel %vm1434, %v1489, 0.0
    %1496 = vadd.xlane.f32.xlu0 %v1495
    %v1497 = vpop.xlane.xlu0 %1496
    %v1498 = vmul.f32 %v1494, %v1497
    %v1499 = vmul.f32 %v1486, %v1489
    %v1500 = vsel %vm1434, %v1499, 0.0
    %1501 = vadd.xlane.f32.xlu0 %v1500
    %v1502 = vpop.xlane.xlu0 %1501
    %v1503 = vsub.f32 %v1498, %v1502
    %v1504 = vsub.f32 1.0, %v1503
    %v1505 = vmul.f32 %v1486, %v1491
    %v1506 = vadd.f32 %v1499, %v1505
    %v1507 = vmul.f32 %v1489, %v1490
    %v1508 = vadd.f32 %v1506, %v1507
    %v1509 = vrcp.pop %v1504
    %v1510 = vmul.f32 %v1508, %v1509
    %v1511 = vmul.f32 %v1490, %v1491
    %v1512 = vmul.f32 %v1511, %v1509
    %v1513 = vrcp.pop %v1512
    %v1514 = vmul.f32 8.0, %v1513
    %v1515 = vmul.f32 %v1510, %v1514
    %v1516 = vsel %vm936, %v1515, 0.0
    %v1517 = vadd.f32 %v1516, 1.0
    %1518 = vst [vmem:[#allocation2] sm:$0x3] %v938
    %1519 = vst [vmem:[#allocation4] sm:$0x3] %v1141
    %1520 = vst [vmem:[#allocation6] sm:$0x3] %v1432
    %1521 = vst [vmem:[#allocation7] sm:$0x3] %v1517
    // Predicated region
    $region34: #{etmc_forward.1} parent=1 // pred_check
      _
    $region35: #{etmc_forward.1} parent=1 // pred_check_branch
      %1523 = sbr.rel (0) target = $region37
    $region36: #{etmc_forward.1} parent=1 // pred_region
      %s1525 = ssub.s32 32, 32
      %1526 = vsyncadd [#allocation3], %s1525
      %s1528 = sshll.u32 [#allocation2], 4
      %s1529 = int_to_ptr.vmem [resolvable:$true] %s1528
      %1531 = dma.vmem_to_hbm [thread:$0]  %s1529, 32, %s8, [#allocation3]
    $region37: #{etmc_forward.1} parent=1 // pred_fallthru
      _
    // Predicated region
    $region38: #{etmc_forward.1} parent=1 // pred_check
      _
    $region39: #{etmc_forward.1} parent=1 // pred_check_branch
      %1533 = sbr.rel (0) target = $region41
    $region40: #{etmc_forward.1} parent=1 // pred_region
      %s1535 = ssub.s32 32, 32
      %1536 = vsyncadd [#allocation5], %s1535
      %s1538 = sshll.u32 [#allocation4], 4
      %s1539 = int_to_ptr.vmem [resolvable:$true] %s1538
      %1541 = dma.vmem_to_hbm [thread:$0]  %s1539, 32, %s9, [#allocation5]
    $region41: #{etmc_forward.1} parent=1 // pred_fallthru
      _
    // Predicated region
    $region42: #{etmc_forward.1} parent=1 // pred_check
      _
    $region43: #{etmc_forward.1} parent=1 // pred_check_branch
      %1543 = sbr.rel (0) target = $region45
    $region44: #{etmc_forward.1} parent=1 // pred_region
      %s1545 = ssub.s32 32, 32
      %1546 = vsyncadd [#allocation5], %s1545
      %s1548 = sshll.u32 [#allocation6], 4
      %s1549 = int_to_ptr.vmem [resolvable:$true] %s1548
      %1551 = dma.vmem_to_hbm [thread:$0]  %s1549, 32, %s10, [#allocation5]
    $region45: #{etmc_forward.1} parent=1 // pred_fallthru
      _
    // Predicated region
    $region46: #{etmc_forward.1} parent=1 // pred_check
      _
    $region47: #{etmc_forward.1} parent=1 // pred_check_branch
      %1553 = sbr.rel (0) target = $region49
    $region48: #{etmc_forward.1} parent=1 // pred_region
      %s1555 = ssub.s32 32, 32
      %1556 = vsyncadd [#allocation8], %s1555
      %s1558 = sshll.u32 [#allocation7], 4
      %s1559 = int_to_ptr.vmem [resolvable:$true] %s1558
      %1561 = dma.vmem_to_hbm [thread:$0]  %s1559, 32, %s11, [#allocation8]
    $region49: #{etmc_forward.1} parent=1 // pred_fallthru
      _
    // Predicated region
    $region50: #{etmc_forward.1} parent=1 // pred_check
      _
    $region51: #{etmc_forward.1} parent=1 // pred_check_branch
      %1563 = sbr.rel (0) target = $region53
    $region52: #{etmc_forward.1} parent=1 // pred_region
      %1564 = dma.done [#allocation3], 32
    $region53: #{etmc_forward.1} parent=1 // pred_fallthru
      _
    // Predicated region
    $region54: #{etmc_forward.1} parent=1 // pred_check
      _
    $region55: #{etmc_forward.1} parent=1 // pred_check_branch
      %1566 = sbr.rel (0) target = $region57
    $region56: #{etmc_forward.1} parent=1 // pred_region
      %1567 = dma.done [#allocation5], 32
    $region57: #{etmc_forward.1} parent=1 // pred_fallthru
      _
    // Predicated region
    $region58: #{etmc_forward.1} parent=1 // pred_check
      _
    $region59: #{etmc_forward.1} parent=1 // pred_check_branch
      %1569 = sbr.rel (0) target = $region61
    $region60: #{etmc_forward.1} parent=1 // pred_region
      %1570 = dma.done [#allocation5], 32
    $region61: #{etmc_forward.1} parent=1 // pred_fallthru
      _
    // Predicated region
    $region62: #{etmc_forward.1} parent=1 // pred_check
      _
    $region63: #{etmc_forward.1} parent=1 // pred_check_branch
      %1572 = sbr.rel (0) target = $region65
    $region64: #{etmc_forward.1} parent=1 // pred_region
      %1573 = dma.done [#allocation8], 32
    $region65: #{etmc_forward.1} parent=1 // pred_fallthru
      _
    %1574 = vsyncpa [#allocation3], 1
    %1575 = vsyncpa [#allocation5], 1
    %1576 = vsyncpa [#allocation8], 1

</llo_original>
